<compile_context>
chip_gen: v5e
topology: v5e:2x2
jax: 0.10.0
libtpu: 0.0.40
codegen_flags: <defaults>
</compile_context>

<pallas_src>
import jax
import jax.numpy as jnp
from jax.experimental import pallas as pl
from jax.experimental.pallas import tpu as pltpu


# ----------------------------------------------------------------------------
# Kernel
# ----------------------------------------------------------------------------
def make_kernel(T, Bp, Ipad, H, O):
    G = 4 * H            # packed gate width, gate order (i, f, o, g)
    W2 = 2 * G           # fused [whh0 | wih1] lane width
    # row offsets of the packed weight slab (all 16-row aligned for bf16 packing)
    r_wih0 = 0
    r_rec0 = Ipad              # [whh0 | wih1]   (H, 2G)
    r_whh1 = Ipad + H          # whh1            (H, G)
    r_aw1 = Ipad + 2 * H       # attention L1    (H, cols 0:H valid)
    r_fcw = Ipad + 3 * H       # final FC        (H, cols 0:O valid)

    def kernel(x_ref, w_ref, b_ref, out_ref, gin_ref, h1_ref):
        f32, bf16 = jnp.float32, jnp.bfloat16

        # ---- packed weights (bf16) -------------------------------------------
        wih0 = w_ref[r_wih0:r_wih0 + Ipad, 0:G]        # (Ipad, G)
        w_rec0 = w_ref[r_rec0:r_rec0 + H, :]           # (H, 2G) = [whh0 | wih1]
        whh1 = w_ref[r_whh1:r_whh1 + H, 0:G]           # (H, G)
        aw1p = w_ref[r_aw1:r_aw1 + H, 0:G]             # (H, G)  cols 0:H valid
        fcwp = w_ref[r_fcw:r_fcw + H, 0:G]             # (H, G)  cols 0:O valid

        # ---- packed biases / small row-form weights (f32) --------------------
        bs = b_ref[...]                                # (8, 2G)
        b0 = bs[0:1, 0:G]                              # (1, G)  b_ih0+b_hh0, g-lanes x2
        b1 = bs[1:2, 0:G]                              # (1, G)
        ab1 = bs[2:3, 0:H]                             # (1, H)
        ab2 = bs[2:3, H:H + 1]                         # (1, 1)
        aw2_row = bs[3:4, 0:H]                         # (1, H)  attention Linear(H,1)
        fcb_row = bs[4:5, 0:G]                         # (1, G)  fc bias in cols 0:O

        # Gate nonlinearity via one EUP pass: lanes [0,3H) sigmoid (i,f,o),
        # lanes [3H,4H) tanh via tanh(z)=2*sigmoid(2z)-1 (weights pre-scaled x2).
        lane = jax.lax.broadcasted_iota(jnp.int32, (Bp, G), 1)
        is_g = lane >= 3 * H
        gsc = jnp.where(is_g, 2.0, 1.0).astype(f32)    # hoisted constants
        gof = jnp.where(is_g, -1.0, 0.0).astype(f32)
        b1_b = jnp.broadcast_to(b1, (Bp, G))           # hoisted broadcast

        def cell(gates, c_prev):
            act = jax.nn.sigmoid(gates) * gsc + gof    # one full-width EUP + VPU fma
            i_g = act[:, 0:H]
            f_g = act[:, H:2 * H]
            o_g = act[:, 2 * H:3 * H]
            g_g = act[:, 3 * H:4 * H]
            c = f_g * c_prev + i_g * g_g
            h = o_g * jnp.tanh(c)
            return h, c

        # ---- hoisted layer-0 input projection, staged in VMEM scratch --------
        gin_ref[...] = jnp.dot(x_ref[...], wih0, preferred_element_type=f32) + b0

        # ---- wavefronted 2-layer recurrence -----------------------------------
        # Wave step s: layer-0 step s (uses h0_{s-1}) and layer-1 step s-1
        # (uses h0_{s-1}, h1_{s-2}); serial chain ~T+1 instead of 2T.
        h0 = jnp.zeros((Bp, H), f32)
        c0 = jnp.zeros((Bp, H), f32)
        h1 = jnp.zeros((Bp, H), f32)
        c1 = jnp.zeros((Bp, H), f32)

        for s in range(T + 1):                         # static unroll (T traced)
            if s == 0:
                # h0_{-1} = 0 -> recurrent term vanishes
                h0, c0 = cell(gin_ref[0:Bp, :], c0)
                continue
            # one 256-lane MXU push covering layer-0 recurrence + layer-1 input proj
            res0 = jnp.dot(h0.astype(bf16), w_rec0,
                           preferred_element_type=f32)            # (Bp, 2G)
            # independent filler matmul (layer-1 recurrence), off the critical path
            res1 = jnp.dot(h1.astype(bf16), whh1,
                           preferred_element_type=f32)            # (Bp, G)
            # layer-1 step s-1
            gates1 = res0[:, G:2 * G] + res1 + b1_b
            h1, c1 = cell(gates1, c1)
            h1_ref[(s - 1) * Bp:s * Bp, :] = h1
            # layer-0 step s
            if s < T:
                gates0 = gin_ref[s * Bp:(s + 1) * Bp, :] + res0[:, 0:G]
                h0, c0 = cell(gates0, c0)

        # ---- attention: Linear(H,H) -> tanh -> Linear(H,1), softmax over T ----
        h_all1 = h1_ref[...]                                          # (T*Bp, H) f32
        e_full = jnp.dot(h_all1.astype(bf16), aw1p, preferred_element_type=f32)
        e = jnp.tanh(e_full[:, 0:H] + ab1)                            # (T*Bp, H)
        scores = jnp.sum(e * aw2_row, axis=-1, keepdims=True) + ab2   # (T*Bp, 1)
        s3 = scores.reshape(T, Bp, 1)
        m = jnp.max(s3, axis=0, keepdims=True)
        p = jnp.exp(s3 - m)
        attn = p / jnp.sum(p, axis=0, keepdims=True)                  # softmax over T
        ctx = jnp.sum(h_all1.reshape(T, Bp, H) * attn, axis=0)        # (Bp, H)

        # ---- final FC (output padded to 128 lanes for an unmasked store) ------
        out_full = jnp.dot(ctx.astype(bf16), fcwp, preferred_element_type=f32)
        out_ref[...] = (out_full + fcb_row).astype(out_ref.dtype)     # (Bp, G)

    return kernel


# ----------------------------------------------------------------------------
# Parameter packing (wrapper-side, plain JAX on tiny data)
# ----------------------------------------------------------------------------
def _prep_gate(w, H):
    """PyTorch gate order (i,f,g,o) -> (i,f,o,g); g block pre-scaled x2 so that
    tanh(z) = 2*sigmoid(2z) - 1 can be computed with a single in-kernel sigmoid."""
    return jnp.concatenate(
        [w[..., 0:2 * H], w[..., 3 * H:4 * H], 2.0 * w[..., 2 * H:3 * H]], axis=-1)


def pack_params(params, I, Ipad, H, O):
    G = 4 * H
    W2 = 2 * G
    prep = lambda w: _prep_gate(w, H)

    rows = Ipad + 4 * H
    w_slab = jnp.zeros((rows, W2), jnp.float32)
    w_slab = w_slab.at[0:I, 0:G].set(prep(params["wih0"]))                    # wih0
    r = Ipad
    w_slab = w_slab.at[r:r + H, 0:G].set(prep(params["whh0"]))                # whh0
    w_slab = w_slab.at[r:r + H, G:W2].set(prep(params["wih1"]))               # wih1
    w_slab = w_slab.at[r + H:r + 2 * H, 0:G].set(prep(params["whh1"]))        # whh1
    w_slab = w_slab.at[Ipad + 2 * H:Ipad + 3 * H, 0:H].set(params["aw1"])     # attn L1
    w_slab = w_slab.at[Ipad + 3 * H:Ipad + 4 * H, 0:O].set(params["fcw"])     # fc
    w_slab = w_slab.astype(jnp.bfloat16)

    b_slab = jnp.zeros((8, W2), jnp.float32)
    b_slab = b_slab.at[0, 0:G].set(prep(params["b0"])[0])
    b_slab = b_slab.at[1, 0:G].set(prep(params["b1"])[0])
    b_slab = b_slab.at[2, 0:H].set(params["ab1"][0])
    b_slab = b_slab.at[2, H].set(params["ab2"][0, 0])
    b_slab = b_slab.at[3, 0:H].set(params["aw2"][:, 0])
    b_slab = b_slab.at[4, 0:O].set(params["fcb"][0])
    return w_slab, b_slab


# ----------------------------------------------------------------------------
# Wrapper
# ----------------------------------------------------------------------------
def lstm_with_attention(x, params, output_size):
    B, T, I = x.shape
    H = params["whh0"].shape[0]
    O = output_size
    G = 4 * H
    Bp = ((B + 7) // 8) * 8          # pad batch to full sublanes
    Ipad = ((I + 15) // 16) * 16     # 16-row-aligned bf16 weight blocks

    # zero-pad batch, go time-major, flatten to (T*Bp, Ipad), cast to bf16
    xp = jnp.zeros((Bp, T, I), jnp.float32).at[0:B].set(x.astype(jnp.float32))
    x_tm = jnp.transpose(xp, (1, 0, 2)).reshape(T * Bp, I)
    x2d = jnp.zeros((T * Bp, Ipad), jnp.float32).at[:, 0:I].set(x_tm)
    x2d = x2d.astype(jnp.bfloat16)

    w_slab, b_slab = pack_params(params, I, Ipad, H, O)

    vmem = pl.BlockSpec(memory_space=pltpu.MemorySpace.VMEM)
    out = pl.pallas_call(
        make_kernel(T, Bp, Ipad, H, O),
        out_shape=jax.ShapeDtypeStruct((Bp, G), jnp.float32),   # 128-lane padded out
        in_specs=[vmem, vmem, vmem],
        out_specs=vmem,
        scratch_shapes=[
            pltpu.VMEM((T * Bp, G), jnp.float32),   # hoisted layer-0 gate inputs
            pltpu.VMEM((T * Bp, H), jnp.float32),   # layer-1 hidden-state history
        ],
    )(x2d, w_slab, b_slab)
    return out[0:B, 0:O]


# ----------------------------------------------------------------------------
# Parameter init + pure-JAX (f32) reference mirroring the PyTorch forward (eval)
# ----------------------------------------------------------------------------
def make_params(key, input_size, hidden_size, output_size):
    """PyTorch-style uniform(-1/sqrt(H), 1/sqrt(H)); weights stored pre-transposed."""
    H = hidden_size
    k = 1.0 / jnp.sqrt(jnp.float32(H))
    keys = jax.random.split(key, 16)

    def u(kk, shape, bound):
        return jax.random.uniform(kk, shape, jnp.float32, -bound, bound)

    return {
        "wih0": u(keys[0], (input_size, 4 * H), k),
        "whh0": u(keys[1], (H, 4 * H), k),
        "b0":   u(keys[2], (1, 4 * H), k) + u(keys[3], (1, 4 * H), k),   # b_ih + b_hh
        "wih1": u(keys[4], (H, 4 * H), k),
        "whh1": u(keys[5], (H, 4 * H), k),
        "b1":   u(keys[6], (1, 4 * H), k) + u(keys[7], (1, 4 * H), k),
        "aw1":  u(keys[8], (H, H), k),
        "ab1":  u(keys[9], (1, H), k),
        "aw2":  u(keys[10], (H, 1), k),
        "ab2":  u(keys[11], (1, 1), k),
        "fcw":  u(keys[12], (H, output_size), k),
        "fcb":  u(keys[13], (1, output_size), k),
    }


def reference_forward(x, params):
    B, T, _ = x.shape
    H = params["whh0"].shape[0]

    def run_layer(inp, wih, whh, b):
        h = jnp.zeros((B, H), jnp.float32)
        c = jnp.zeros((B, H), jnp.float32)
        outs = []
        for t in range(T):
            gates = inp[:, t, :] @ wih + h @ whh + b
            i_g = jax.nn.sigmoid(gates[:, 0 * H:1 * H])
            f_g = jax.nn.sigmoid(gates[:, 1 * H:2 * H])
            g_g = jnp.tanh(gates[:, 2 * H:3 * H])
            o_g = jax.nn.sigmoid(gates[:, 3 * H:4 * H])
            c = f_g * c + i_g * g_g
            h = o_g * jnp.tanh(c)
            outs.append(h)
        return jnp.stack(outs, axis=1)

    o0 = run_layer(x, params["wih0"], params["whh0"], params["b0"])
    o1 = run_layer(o0, params["wih1"], params["whh1"], params["b1"])
    scores = jnp.tanh(o1 @ params["aw1"] + params["ab1"]) @ params["aw2"] + params["ab2"]
    attn = jax.nn.softmax(scores, axis=1)
    ctx = jnp.sum(o1 * attn, axis=1)
    return ctx @ params["fcw"] + params["fcb"]


if __name__ == "__main__":
    # Shapes consistent with the module: B=2, T=8, input_size=8, hidden_size=32,
    # num_layers=2, output_size=1.
    B, T, I, H, O = 2, 8, 8, 32, 1

    key = jax.random.PRNGKey(0)
    kx, kp = jax.random.split(key)
    x = jax.random.normal(kx, (B, T, I), dtype=jnp.float32)
    params = make_params(kp, I, H, O)

    out = lstm_with_attention(x, params, O)
    out = jax.block_until_ready(out)

    ref = reference_forward(x, params)
    assert out.shape == (B, O), out.shape
    # bf16 MXU operands with f32 accumulation -> bf16-appropriate tolerance.
    assert jnp.allclose(out, ref, atol=2e-2, rtol=2e-2), (out, ref)

    print("KERNEL_OK")
</pallas_src>

<mosaic_0001>
module attributes {stable_mosaic.version = 11 : i64} {
  func.func @kernel(%arg0: memref<64x16xbf16, #tpu.memory_space<vmem>>, %arg1: memref<144x256xbf16, #tpu.memory_space<vmem>>, %arg2: memref<8x256xf32, #tpu.memory_space<vmem>>, %arg3: memref<8x128xf32, #tpu.memory_space<vmem>>, %arg4: memref<64x128xf32, #tpu.memory_space<vmem>>, %arg5: memref<64x32xf32, #tpu.memory_space<vmem>>) attributes {dimension_semantics = [], scalar_prefetch = 0 : i64, scratch_operands = 2 : i64, tpu.core_type = #tpu.core_type<tc>} {
    %c0 = arith.constant 0 : index
    %c0_0 = arith.constant 0 : index
    %0 = vector.load %arg1[%c0, %c0_0] : memref<144x256xbf16, #tpu.memory_space<vmem>>, vector<16x128xbf16>
    %c16 = arith.constant 16 : index
    %c0_1 = arith.constant 0 : index
    %1 = vector.load %arg1[%c16, %c0_1] : memref<144x256xbf16, #tpu.memory_space<vmem>>, vector<32x256xbf16>
    %c48 = arith.constant 48 : index
    %c0_2 = arith.constant 0 : index
    %2 = vector.load %arg1[%c48, %c0_2] : memref<144x256xbf16, #tpu.memory_space<vmem>>, vector<32x128xbf16>
    %c80 = arith.constant 80 : index
    %c0_3 = arith.constant 0 : index
    %3 = vector.load %arg1[%c80, %c0_3] : memref<144x256xbf16, #tpu.memory_space<vmem>>, vector<32x128xbf16>
    %c112 = arith.constant 112 : index
    %c0_4 = arith.constant 0 : index
    %4 = vector.load %arg1[%c112, %c0_4] : memref<144x256xbf16, #tpu.memory_space<vmem>>, vector<32x128xbf16>
    %c0_5 = arith.constant 0 : index
    %c0_6 = arith.constant 0 : index
    %5 = vector.load %arg2[%c0_5, %c0_6] : memref<8x256xf32, #tpu.memory_space<vmem>>, vector<8x256xf32>
    %6 = vector.extract_strided_slice %5 {offsets = [0, 0], sizes = [1, 128], strides = [1, 1]} : vector<8x256xf32> to vector<1x128xf32>
    %7 = vector.extract_strided_slice %5 {offsets = [1, 0], sizes = [1, 128], strides = [1, 1]} : vector<8x256xf32> to vector<1x128xf32>
    %8 = vector.extract_strided_slice %5 {offsets = [2, 0], sizes = [1, 32], strides = [1, 1]} : vector<8x256xf32> to vector<1x32xf32>
    %9 = vector.extract_strided_slice %5 {offsets = [2, 32], sizes = [1, 1], strides = [1, 1]} : vector<8x256xf32> to vector<1x1xf32>
    %10 = vector.extract_strided_slice %5 {offsets = [3, 0], sizes = [1, 32], strides = [1, 1]} : vector<8x256xf32> to vector<1x32xf32>
    %11 = vector.extract_strided_slice %5 {offsets = [4, 0], sizes = [1, 128], strides = [1, 1]} : vector<8x256xf32> to vector<1x128xf32>
    %12 = tpu.iota {dimensions = array<i32: 1>} : vector<8x128xi32>
    %c96_i32 = arith.constant 96 : i32
    %13 = vector.broadcast %c96_i32 : i32 to vector<8x128xi32>
    %14 = arith.cmpi sge, %12, %13 : vector<8x128xi32>
    %cst = arith.constant 2.000000e+00 : f32
    %cst_7 = arith.constant 1.000000e+00 : f32
    %15 = vector.broadcast %cst : f32 to vector<8x128xf32>
    %16 = vector.broadcast %cst_7 : f32 to vector<8x128xf32>
    %17 = arith.select %14, %15, %16 : vector<8x128xi1>, vector<8x128xf32>
    %cst_8 = arith.constant -1.000000e+00 : f32
    %cst_9 = arith.constant 0.000000e+00 : f32
    %18 = vector.broadcast %cst_8 : f32 to vector<8x128xf32>
    %19 = vector.broadcast %cst_9 : f32 to vector<8x128xf32>
    %20 = arith.select %14, %18, %19 : vector<8x128xi1>, vector<8x128xf32>
    %21 = vector.shape_cast %7 : vector<1x128xf32> to vector<1x128xf32>
    %22 = vector.broadcast %21 : vector<1x128xf32> to vector<8x128xf32>
    %c0_10 = arith.constant 0 : index
    %c0_11 = arith.constant 0 : index
    %23 = vector.load %arg0[%c0_10, %c0_11] : memref<64x16xbf16, #tpu.memory_space<vmem>>, vector<64x16xbf16>
    %cst_12 = arith.constant dense<0.000000e+00> : vector<64x128xf32>
    %24 = tpu.matmul %23, %0, %cst_12 {dimension_numbers = #tpu.dot_dimension_numbers<[1], [0], [0], [1], [0, 0, 1, 1], [], []>} : vector<64x16xbf16>, vector<16x128xbf16>, vector<64x128xf32> -> vector<64x128xf32>
    %25 = vector.broadcast %6 : vector<1x128xf32> to vector<64x128xf32>
    %26 = arith.addf %24, %25 : vector<64x128xf32>
    %c0_13 = arith.constant 0 : index
    %c0_14 = arith.constant 0 : index
    %27 = vector.load %arg4[%c0_13, %c0_14] : memref<64x128xf32, #tpu.memory_space<vmem>>, vector<64x128xf32>
    tpu.vector_store %arg4[%c0_13, %c0_14], %26 {strides = array<i32>} : memref<64x128xf32, #tpu.memory_space<vmem>>, vector<64x128xf32>,
    %cst_15 = arith.constant 0.000000e+00 : f32
    %28 = vector.broadcast %cst_15 : f32 to vector<8x32xf32>
    %cst_16 = arith.constant 0.000000e+00 : f32
    %29 = vector.broadcast %cst_16 : f32 to vector<8x32xf32>
    %cst_17 = arith.constant 0.000000e+00 : f32
    %30 = vector.broadcast %cst_17 : f32 to vector<8x32xf32>
    %c0_18 = arith.constant 0 : index
    %c0_19 = arith.constant 0 : index
    %31 = vector.load %arg4[%c0_18, %c0_19] : memref<64x128xf32, #tpu.memory_space<vmem>>, vector<8x128xf32>
    %32 = arith.negf %31 : vector<8x128xf32>
    %33 = math.exp %32 : vector<8x128xf32>
    %cst_20 = arith.constant 1.000000e+00 : f32
    %34 = vector.broadcast %cst_20 : f32 to vector<8x128xf32>
    %35 = arith.addf %34, %33 : vector<8x128xf32>
    %36 = arith.divf %34, %35 : vector<8x128xf32>
    %37 = arith.mulf %36, %17 : vector<8x128xf32>
    %38 = arith.addf %37, %20 : vector<8x128xf32>
    %39 = vector.extract_strided_slice %38 {offsets = [0, 0], sizes = [8, 32], strides = [1, 1]} : vector<8x128xf32> to vector<8x32xf32>
    %40 = vector.extract_strided_slice %38 {offsets = [0, 32], sizes = [8, 32], strides = [1, 1]} : vector<8x128xf32> to vector<8x32xf32>
    %41 = vector.extract_strided_slice %38 {offsets = [0, 64], sizes = [8, 32], strides = [1, 1]} : vector<8x128xf32> to vector<8x32xf32>
    %42 = vector.extract_strided_slice %38 {offsets = [0, 96], sizes = [8, 32], strides = [1, 1]} : vector<8x128xf32> to vector<8x32xf32>
    %43 = arith.mulf %40, %28 : vector<8x32xf32>
    %44 = arith.mulf %39, %42 : vector<8x32xf32>
    %45 = arith.addf %43, %44 : vector<8x32xf32>
    %46 = math.tanh %45 : vector<8x32xf32>
    %47 = arith.mulf %41, %46 : vector<8x32xf32>
    %48 = arith.truncf %47 : vector<8x32xf32> to vector<8x32xbf16>
    %cst_21 = arith.constant dense<0.000000e+00> : vector<8x256xf32>
    %49 = tpu.matmul %48, %1, %cst_21 {dimension_numbers = #tpu.dot_dimension_numbers<[1], [0], [0], [1], [0, 0, 1, 1], [], []>} : vector<8x32xbf16>, vector<32x256xbf16>, vector<8x256xf32> -> vector<8x256xf32>
    %50 = arith.truncf %29 : vector<8x32xf32> to vector<8x32xbf16>
    %cst_22 = arith.constant dense<0.000000e+00> : vector<8x128xf32>
    %51 = tpu.matmul %50, %2, %cst_22 {dimension_numbers = #tpu.dot_dimension_numbers<[1], [0], [0], [1], [0, 0, 1, 1], [], []>} : vector<8x32xbf16>, vector<32x128xbf16>, vector<8x128xf32> -> vector<8x128xf32>
    %52 = vector.extract_strided_slice %49 {offsets = [0, 128], sizes = [8, 128], strides = [1, 1]} : vector<8x256xf32> to vector<8x128xf32>
    %53 = arith.addf %52, %51 : vector<8x128xf32>
    %54 = arith.addf %53, %22 : vector<8x128xf32>
    %55 = arith.negf %54 : vector<8x128xf32>
    %56 = math.exp %55 : vector<8x128xf32>
    %cst_23 = arith.constant 1.000000e+00 : f32
    %57 = vector.broadcast %cst_23 : f32 to vector<8x128xf32>
    %58 = arith.addf %57, %56 : vector<8x128xf32>
    %59 = arith.divf %57, %58 : vector<8x128xf32>
    %60 = arith.mulf %59, %17 : vector<8x128xf32>
    %61 = arith.addf %60, %20 : vector<8x128xf32>
    %62 = vector.extract_strided_slice %61 {offsets = [0, 0], sizes = [8, 32], strides = [1, 1]} : vector<8x128xf32> to vector<8x32xf32>
    %63 = vector.extract_strided_slice %61 {offsets = [0, 32], sizes = [8, 32], strides = [1, 1]} : vector<8x128xf32> to vector<8x32xf32>
    %64 = vector.extract_strided_slice %61 {offsets = [0, 64], sizes = [8, 32], strides = [1, 1]} : vector<8x128xf32> to vector<8x32xf32>
    %65 = vector.extract_strided_slice %61 {offsets = [0, 96], sizes = [8, 32], strides = [1, 1]} : vector<8x128xf32> to vector<8x32xf32>
    %66 = arith.mulf %63, %30 : vector<8x32xf32>
    %67 = arith.mulf %62, %65 : vector<8x32xf32>
    %68 = arith.addf %66, %67 : vector<8x32xf32>
    %69 = math.tanh %68 : vector<8x32xf32>
    %70 = arith.mulf %64, %69 : vector<8x32xf32>
    %c0_24 = arith.constant 0 : index
    %c0_25 = arith.constant 0 : index
    %71 = vector.load %arg5[%c0_24, %c0_25] : memref<64x32xf32, #tpu.memory_space<vmem>>, vector<8x32xf32>
    tpu.vector_store %arg5[%c0_24, %c0_25], %70 {strides = array<i32>} : memref<64x32xf32, #tpu.memory_space<vmem>>, vector<8x32xf32>,
    %c8 = arith.constant 8 : index
    %c0_26 = arith.constant 0 : index
    %72 = vector.load %arg4[%c8, %c0_26] : memref<64x128xf32, #tpu.memory_space<vmem>>, vector<8x128xf32>
    %73 = vector.extract_strided_slice %49 {offsets = [0, 0], sizes = [8, 128], strides = [1, 1]} : vector<8x256xf32> to vector<8x128xf32>
    %74 = arith.addf %72, %73 : vector<8x128xf32>
    %75 = arith.negf %74 : vector<8x128xf32>
    %76 = math.exp %75 : vector<8x128xf32>
    %cst_27 = arith.constant 1.000000e+00 : f32
    %77 = vector.broadcast %cst_27 : f32 to vector<8x128xf32>
    %78 = arith.addf %77, %76 : vector<8x128xf32>
    %79 = arith.divf %77, %78 : vector<8x128xf32>
    %80 = arith.mulf %79, %17 : vector<8x128xf32>
    %81 = arith.addf %80, %20 : vector<8x128xf32>
    %82 = vector.extract_strided_slice %81 {offsets = [0, 0], sizes = [8, 32], strides = [1, 1]} : vector<8x128xf32> to vector<8x32xf32>
    %83 = vector.extract_strided_slice %81 {offsets = [0, 32], sizes = [8, 32], strides = [1, 1]} : vector<8x128xf32> to vector<8x32xf32>
    %84 = vector.extract_strided_slice %81 {offsets = [0, 64], sizes = [8, 32], strides = [1, 1]} : vector<8x128xf32> to vector<8x32xf32>
    %85 = vector.extract_strided_slice %81 {offsets = [0, 96], sizes = [8, 32], strides = [1, 1]} : vector<8x128xf32> to vector<8x32xf32>
    %86 = arith.mulf %83, %45 : vector<8x32xf32>
    %87 = arith.mulf %82, %85 : vector<8x32xf32>
    %88 = arith.addf %86, %87 : vector<8x32xf32>
    %89 = math.tanh %88 : vector<8x32xf32>
    %90 = arith.mulf %84, %89 : vector<8x32xf32>
    %91 = arith.truncf %90 : vector<8x32xf32> to vector<8x32xbf16>
    %cst_28 = arith.constant dense<0.000000e+00> : vector<8x256xf32>
    %92 = tpu.matmul %91, %1, %cst_28 {dimension_numbers = #tpu.dot_dimension_numbers<[1], [0], [0], [1], [0, 0, 1, 1], [], []>} : vector<8x32xbf16>, vector<32x256xbf16>, vector<8x256xf32> -> vector<8x256xf32>
    %93 = arith.truncf %70 : vector<8x32xf32> to vector<8x32xbf16>
    %cst_29 = arith.constant dense<0.000000e+00> : vector<8x128xf32>
    %94 = tpu.matmul %93, %2, %cst_29 {dimension_numbers = #tpu.dot_dimension_numbers<[1], [0], [0], [1], [0, 0, 1, 1], [], []>} : vector<8x32xbf16>, vector<32x128xbf16>, vector<8x128xf32> -> vector<8x128xf32>
    %95 = vector.extract_strided_slice %92 {offsets = [0, 128], sizes = [8, 128], strides = [1, 1]} : vector<8x256xf32> to vector<8x128xf32>
    %96 = arith.addf %95, %94 : vector<8x128xf32>
    %97 = arith.addf %96, %22 : vector<8x128xf32>
    %98 = arith.negf %97 : vector<8x128xf32>
    %99 = math.exp %98 : vector<8x128xf32>
    %cst_30 = arith.constant 1.000000e+00 : f32
    %100 = vector.broadcast %cst_30 : f32 to vector<8x128xf32>
    %101 = arith.addf %100, %99 : vector<8x128xf32>
    %102 = arith.divf %100, %101 : vector<8x128xf32>
    %103 = arith.mulf %102, %17 : vector<8x128xf32>
    %104 = arith.addf %103, %20 : vector<8x128xf32>
    %105 = vector.extract_strided_slice %104 {offsets = [0, 0], sizes = [8, 32], strides = [1, 1]} : vector<8x128xf32> to vector<8x32xf32>
    %106 = vector.extract_strided_slice %104 {offsets = [0, 32], sizes = [8, 32], strides = [1, 1]} : vector<8x128xf32> to vector<8x32xf32>
    %107 = vector.extract_strided_slice %104 {offsets = [0, 64], sizes = [8, 32], strides = [1, 1]} : vector<8x128xf32> to vector<8x32xf32>
    %108 = vector.extract_strided_slice %104 {offsets = [0, 96], sizes = [8, 32], strides = [1, 1]} : vector<8x128xf32> to vector<8x32xf32>
    %109 = arith.mulf %106, %68 : vector<8x32xf32>
    %110 = arith.mulf %105, %108 : vector<8x32xf32>
    %111 = arith.addf %109, %110 : vector<8x32xf32>
    %112 = math.tanh %111 : vector<8x32xf32>
    %113 = arith.mulf %107, %112 : vector<8x32xf32>
    %c8_31 = arith.constant 8 : index
    %c0_32 = arith.constant 0 : index
    %114 = vector.load %arg5[%c8_31, %c0_32] : memref<64x32xf32, #tpu.memory_space<vmem>>, vector<8x32xf32>
    tpu.vector_store %arg5[%c8_31, %c0_32], %113 {strides = array<i32>} : memref<64x32xf32, #tpu.memory_space<vmem>>, vector<8x32xf32>,
    %c16_33 = arith.constant 16 : index
    %c0_34 = arith.constant 0 : index
    %115 = vector.load %arg4[%c16_33, %c0_34] : memref<64x128xf32, #tpu.memory_space<vmem>>, vector<8x128xf32>
    %116 = vector.extract_strided_slice %92 {offsets = [0, 0], sizes = [8, 128], strides = [1, 1]} : vector<8x256xf32> to vector<8x128xf32>
    %117 = arith.addf %115, %116 : vector<8x128xf32>
    %118 = arith.negf %117 : vector<8x128xf32>
    %119 = math.exp %118 : vector<8x128xf32>
    %cst_35 = arith.constant 1.000000e+00 : f32
    %120 = vector.broadcast %cst_35 : f32 to vector<8x128xf32>
    %121 = arith.addf %120, %119 : vector<8x128xf32>
    %122 = arith.divf %120, %121 : vector<8x128xf32>
    %123 = arith.mulf %122, %17 : vector<8x128xf32>
    %124 = arith.addf %123, %20 : vector<8x128xf32>
    %125 = vector.extract_strided_slice %124 {offsets = [0, 0], sizes = [8, 32], strides = [1, 1]} : vector<8x128xf32> to vector<8x32xf32>
    %126 = vector.extract_strided_slice %124 {offsets = [0, 32], sizes = [8, 32], strides = [1, 1]} : vector<8x128xf32> to vector<8x32xf32>
    %127 = vector.extract_strided_slice %124 {offsets = [0, 64], sizes = [8, 32], strides = [1, 1]} : vector<8x128xf32> to vector<8x32xf32>
    %128 = vector.extract_strided_slice %124 {offsets = [0, 96], sizes = [8, 32], strides = [1, 1]} : vector<8x128xf32> to vector<8x32xf32>
    %129 = arith.mulf %126, %88 : vector<8x32xf32>
    %130 = arith.mulf %125, %128 : vector<8x32xf32>
    %131 = arith.addf %129, %130 : vector<8x32xf32>
    %132 = math.tanh %131 : vector<8x32xf32>
    %133 = arith.mulf %127, %132 : vector<8x32xf32>
    %134 = arith.truncf %133 : vector<8x32xf32> to vector<8x32xbf16>
    %cst_36 = arith.constant dense<0.000000e+00> : vector<8x256xf32>
    %135 = tpu.matmul %134, %1, %cst_36 {dimension_numbers = #tpu.dot_dimension_numbers<[1], [0], [0], [1], [0, 0, 1, 1], [], []>} : vector<8x32xbf16>, vector<32x256xbf16>, vector<8x256xf32> -> vector<8x256xf32>
    %136 = arith.truncf %113 : vector<8x32xf32> to vector<8x32xbf16>
    %cst_37 = arith.constant dense<0.000000e+00> : vector<8x128xf32>
    %137 = tpu.matmul %136, %2, %cst_37 {dimension_numbers = #tpu.dot_dimension_numbers<[1], [0], [0], [1], [0, 0, 1, 1], [], []>} : vector<8x32xbf16>, vector<32x128xbf16>, vector<8x128xf32> -> vector<8x128xf32>
    %138 = vector.extract_strided_slice %135 {offsets = [0, 128], sizes = [8, 128], strides = [1, 1]} : vector<8x256xf32> to vector<8x128xf32>
    %139 = arith.addf %138, %137 : vector<8x128xf32>
    %140 = arith.addf %139, %22 : vector<8x128xf32>
    %141 = arith.negf %140 : vector<8x128xf32>
    %142 = math.exp %141 : vector<8x128xf32>
    %cst_38 = arith.constant 1.000000e+00 : f32
    %143 = vector.broadcast %cst_38 : f32 to vector<8x128xf32>
    %144 = arith.addf %143, %142 : vector<8x128xf32>
    %145 = arith.divf %143, %144 : vector<8x128xf32>
    %146 = arith.mulf %145, %17 : vector<8x128xf32>
    %147 = arith.addf %146, %20 : vector<8x128xf32>
    %148 = vector.extract_strided_slice %147 {offsets = [0, 0], sizes = [8, 32], strides = [1, 1]} : vector<8x128xf32> to vector<8x32xf32>
    %149 = vector.extract_strided_slice %147 {offsets = [0, 32], sizes = [8, 32], strides = [1, 1]} : vector<8x128xf32> to vector<8x32xf32>
    %150 = vector.extract_strided_slice %147 {offsets = [0, 64], sizes = [8, 32], strides = [1, 1]} : vector<8x128xf32> to vector<8x32xf32>
    %151 = vector.extract_strided_slice %147 {offsets = [0, 96], sizes = [8, 32], strides = [1, 1]} : vector<8x128xf32> to vector<8x32xf32>
    %152 = arith.mulf %149, %111 : vector<8x32xf32>
    %153 = arith.mulf %148, %151 : vector<8x32xf32>
    %154 = arith.addf %152, %153 : vector<8x32xf32>
    %155 = math.tanh %154 : vector<8x32xf32>
    %156 = arith.mulf %150, %155 : vector<8x32xf32>
    %c16_39 = arith.constant 16 : index
    %c0_40 = arith.constant 0 : index
    %157 = vector.load %arg5[%c16_39, %c0_40] : memref<64x32xf32, #tpu.memory_space<vmem>>, vector<8x32xf32>
    tpu.vector_store %arg5[%c16_39, %c0_40], %156 {strides = array<i32>} : memref<64x32xf32, #tpu.memory_space<vmem>>, vector<8x32xf32>,
    %c24 = arith.constant 24 : index
    %c0_41 = arith.constant 0 : index
    %158 = vector.load %arg4[%c24, %c0_41] : memref<64x128xf32, #tpu.memory_space<vmem>>, vector<8x128xf32>
    %159 = vector.extract_strided_slice %135 {offsets = [0, 0], sizes = [8, 128], strides = [1, 1]} : vector<8x256xf32> to vector<8x128xf32>
    %160 = arith.addf %158, %159 : vector<8x128xf32>
    %161 = arith.negf %160 : vector<8x128xf32>
    %162 = math.exp %161 : vector<8x128xf32>
    %cst_42 = arith.constant 1.000000e+00 : f32
    %163 = vector.broadcast %cst_42 : f32 to vector<8x128xf32>
    %164 = arith.addf %163, %162 : vector<8x128xf32>
    %165 = arith.divf %163, %164 : vector<8x128xf32>
    %166 = arith.mulf %165, %17 : vector<8x128xf32>
    %167 = arith.addf %166, %20 : vector<8x128xf32>
    %168 = vector.extract_strided_slice %167 {offsets = [0, 0], sizes = [8, 32], strides = [1, 1]} : vector<8x128xf32> to vector<8x32xf32>
    %169 = vector.extract_strided_slice %167 {offsets = [0, 32], sizes = [8, 32], strides = [1, 1]} : vector<8x128xf32> to vector<8x32xf32>
    %170 = vector.extract_strided_slice %167 {offsets = [0, 64], sizes = [8, 32], strides = [1, 1]} : vector<8x128xf32> to vector<8x32xf32>
    %171 = vector.extract_strided_slice %167 {offsets = [0, 96], sizes = [8, 32], strides = [1, 1]} : vector<8x128xf32> to vector<8x32xf32>
    %172 = arith.mulf %169, %131 : vector<8x32xf32>
    %173 = arith.mulf %168, %171 : vector<8x32xf32>
    %174 = arith.addf %172, %173 : vector<8x32xf32>
    %175 = math.tanh %174 : vector<8x32xf32>
    %176 = arith.mulf %170, %175 : vector<8x32xf32>
    %177 = arith.truncf %176 : vector<8x32xf32> to vector<8x32xbf16>
    %cst_43 = arith.constant dense<0.000000e+00> : vector<8x256xf32>
    %178 = tpu.matmul %177, %1, %cst_43 {dimension_numbers = #tpu.dot_dimension_numbers<[1], [0], [0], [1], [0, 0, 1, 1], [], []>} : vector<8x32xbf16>, vector<32x256xbf16>, vector<8x256xf32> -> vector<8x256xf32>
    %179 = arith.truncf %156 : vector<8x32xf32> to vector<8x32xbf16>
    %cst_44 = arith.constant dense<0.000000e+00> : vector<8x128xf32>
    %180 = tpu.matmul %179, %2, %cst_44 {dimension_numbers = #tpu.dot_dimension_numbers<[1], [0], [0], [1], [0, 0, 1, 1], [], []>} : vector<8x32xbf16>, vector<32x128xbf16>, vector<8x128xf32> -> vector<8x128xf32>
    %181 = vector.extract_strided_slice %178 {offsets = [0, 128], sizes = [8, 128], strides = [1, 1]} : vector<8x256xf32> to vector<8x128xf32>
    %182 = arith.addf %181, %180 : vector<8x128xf32>
    %183 = arith.addf %182, %22 : vector<8x128xf32>
    %184 = arith.negf %183 : vector<8x128xf32>
    %185 = math.exp %184 : vector<8x128xf32>
    %cst_45 = arith.constant 1.000000e+00 : f32
    %186 = vector.broadcast %cst_45 : f32 to vector<8x128xf32>
    %187 = arith.addf %186, %185 : vector<8x128xf32>
    %188 = arith.divf %186, %187 : vector<8x128xf32>
    %189 = arith.mulf %188, %17 : vector<8x128xf32>
    %190 = arith.addf %189, %20 : vector<8x128xf32>
    %191 = vector.extract_strided_slice %190 {offsets = [0, 0], sizes = [8, 32], strides = [1, 1]} : vector<8x128xf32> to vector<8x32xf32>
    %192 = vector.extract_strided_slice %190 {offsets = [0, 32], sizes = [8, 32], strides = [1, 1]} : vector<8x128xf32> to vector<8x32xf32>
    %193 = vector.extract_strided_slice %190 {offsets = [0, 64], sizes = [8, 32], strides = [1, 1]} : vector<8x128xf32> to vector<8x32xf32>
    %194 = vector.extract_strided_slice %190 {offsets = [0, 96], sizes = [8, 32], strides = [1, 1]} : vector<8x128xf32> to vector<8x32xf32>
    %195 = arith.mulf %192, %154 : vector<8x32xf32>
    %196 = arith.mulf %191, %194 : vector<8x32xf32>
    %197 = arith.addf %195, %196 : vector<8x32xf32>
    %198 = math.tanh %197 : vector<8x32xf32>
    %199 = arith.mulf %193, %198 : vector<8x32xf32>
    %c24_46 = arith.constant 24 : index
    %c0_47 = arith.constant 0 : index
    %200 = vector.load %arg5[%c24_46, %c0_47] : memref<64x32xf32, #tpu.memory_space<vmem>>, vector<8x32xf32>
    tpu.vector_store %arg5[%c24_46, %c0_47], %199 {strides = array<i32>} : memref<64x32xf32, #tpu.memory_space<vmem>>, vector<8x32xf32>,
    %c32 = arith.constant 32 : index
    %c0_48 = arith.constant 0 : index
    %201 = vector.load %arg4[%c32, %c0_48] : memref<64x128xf32, #tpu.memory_space<vmem>>, vector<8x128xf32>
    %202 = vector.extract_strided_slice %178 {offsets = [0, 0], sizes = [8, 128], strides = [1, 1]} : vector<8x256xf32> to vector<8x128xf32>
    %203 = arith.addf %201, %202 : vector<8x128xf32>
    %204 = arith.negf %203 : vector<8x128xf32>
    %205 = math.exp %204 : vector<8x128xf32>
    %cst_49 = arith.constant 1.000000e+00 : f32
    %206 = vector.broadcast %cst_49 : f32 to vector<8x128xf32>
    %207 = arith.addf %206, %205 : vector<8x128xf32>
    %208 = arith.divf %206, %207 : vector<8x128xf32>
    %209 = arith.mulf %208, %17 : vector<8x128xf32>
    %210 = arith.addf %209, %20 : vector<8x128xf32>
    %211 = vector.extract_strided_slice %210 {offsets = [0, 0], sizes = [8, 32], strides = [1, 1]} : vector<8x128xf32> to vector<8x32xf32>
    %212 = vector.extract_strided_slice %210 {offsets = [0, 32], sizes = [8, 32], strides = [1, 1]} : vector<8x128xf32> to vector<8x32xf32>
    %213 = vector.extract_strided_slice %210 {offsets = [0, 64], sizes = [8, 32], strides = [1, 1]} : vector<8x128xf32> to vector<8x32xf32>
    %214 = vector.extract_strided_slice %210 {offsets = [0, 96], sizes = [8, 32], strides = [1, 1]} : vector<8x128xf32> to vector<8x32xf32>
    %215 = arith.mulf %212, %174 : vector<8x32xf32>
    %216 = arith.mulf %211, %214 : vector<8x32xf32>
    %217 = arith.addf %215, %216 : vector<8x32xf32>
    %218 = math.tanh %217 : vector<8x32xf32>
    %219 = arith.mulf %213, %218 : vector<8x32xf32>
    %220 = arith.truncf %219 : vector<8x32xf32> to vector<8x32xbf16>
    %cst_50 = arith.constant dense<0.000000e+00> : vector<8x256xf32>
    %221 = tpu.matmul %220, %1, %cst_50 {dimension_numbers = #tpu.dot_dimension_numbers<[1], [0], [0], [1], [0, 0, 1, 1], [], []>} : vector<8x32xbf16>, vector<32x256xbf16>, vector<8x256xf32> -> vector<8x256xf32>
    %222 = arith.truncf %199 : vector<8x32xf32> to vector<8x32xbf16>
    %cst_51 = arith.constant dense<0.000000e+00> : vector<8x128xf32>
    %223 = tpu.matmul %222, %2, %cst_51 {dimension_numbers = #tpu.dot_dimension_numbers<[1], [0], [0], [1], [0, 0, 1, 1], [], []>} : vector<8x32xbf16>, vector<32x128xbf16>, vector<8x128xf32> -> vector<8x128xf32>
    %224 = vector.extract_strided_slice %221 {offsets = [0, 128], sizes = [8, 128], strides = [1, 1]} : vector<8x256xf32> to vector<8x128xf32>
    %225 = arith.addf %224, %223 : vector<8x128xf32>
    %226 = arith.addf %225, %22 : vector<8x128xf32>
    %227 = arith.negf %226 : vector<8x128xf32>
    %228 = math.exp %227 : vector<8x128xf32>
    %cst_52 = arith.constant 1.000000e+00 : f32
    %229 = vector.broadcast %cst_52 : f32 to vector<8x128xf32>
    %230 = arith.addf %229, %228 : vector<8x128xf32>
    %231 = arith.divf %229, %230 : vector<8x128xf32>
    %232 = arith.mulf %231, %17 : vector<8x128xf32>
    %233 = arith.addf %232, %20 : vector<8x128xf32>
    %234 = vector.extract_strided_slice %233 {offsets = [0, 0], sizes = [8, 32], strides = [1, 1]} : vector<8x128xf32> to vector<8x32xf32>
    %235 = vector.extract_strided_slice %233 {offsets = [0, 32], sizes = [8, 32], strides = [1, 1]} : vector<8x128xf32> to vector<8x32xf32>
    %236 = vector.extract_strided_slice %233 {offsets = [0, 64], sizes = [8, 32], strides = [1, 1]} : vector<8x128xf32> to vector<8x32xf32>
    %237 = vector.extract_strided_slice %233 {offsets = [0, 96], sizes = [8, 32], strides = [1, 1]} : vector<8x128xf32> to vector<8x32xf32>
    %238 = arith.mulf %235, %197 : vector<8x32xf32>
    %239 = arith.mulf %234, %237 : vector<8x32xf32>
    %240 = arith.addf %238, %239 : vector<8x32xf32>
    %241 = math.tanh %240 : vector<8x32xf32>
    %242 = arith.mulf %236, %241 : vector<8x32xf32>
    %c32_53 = arith.constant 32 : index
    %c0_54 = arith.constant 0 : index
    %243 = vector.load %arg5[%c32_53, %c0_54] : memref<64x32xf32, #tpu.memory_space<vmem>>, vector<8x32xf32>
    tpu.vector_store %arg5[%c32_53, %c0_54], %242 {strides = array<i32>} : memref<64x32xf32, #tpu.memory_space<vmem>>, vector<8x32xf32>,
    %c40 = arith.constant 40 : index
    %c0_55 = arith.constant 0 : index
    %244 = vector.load %arg4[%c40, %c0_55] : memref<64x128xf32, #tpu.memory_space<vmem>>, vector<8x128xf32>
    %245 = vector.extract_strided_slice %221 {offsets = [0, 0], sizes = [8, 128], strides = [1, 1]} : vector<8x256xf32> to vector<8x128xf32>
    %246 = arith.addf %244, %245 : vector<8x128xf32>
    %247 = arith.negf %246 : vector<8x128xf32>
    %248 = math.exp %247 : vector<8x128xf32>
    %cst_56 = arith.constant 1.000000e+00 : f32
    %249 = vector.broadcast %cst_56 : f32 to vector<8x128xf32>
    %250 = arith.addf %249, %248 : vector<8x128xf32>
    %251 = arith.divf %249, %250 : vector<8x128xf32>
    %252 = arith.mulf %251, %17 : vector<8x128xf32>
    %253 = arith.addf %252, %20 : vector<8x128xf32>
    %254 = vector.extract_strided_slice %253 {offsets = [0, 0], sizes = [8, 32], strides = [1, 1]} : vector<8x128xf32> to vector<8x32xf32>
    %255 = vector.extract_strided_slice %253 {offsets = [0, 32], sizes = [8, 32], strides = [1, 1]} : vector<8x128xf32> to vector<8x32xf32>
    %256 = vector.extract_strided_slice %253 {offsets = [0, 64], sizes = [8, 32], strides = [1, 1]} : vector<8x128xf32> to vector<8x32xf32>
    %257 = vector.extract_strided_slice %253 {offsets = [0, 96], sizes = [8, 32], strides = [1, 1]} : vector<8x128xf32> to vector<8x32xf32>
    %258 = arith.mulf %255, %217 : vector<8x32xf32>
    %259 = arith.mulf %254, %257 : vector<8x32xf32>
    %260 = arith.addf %258, %259 : vector<8x32xf32>
    %261 = math.tanh %260 : vector<8x32xf32>
    %262 = arith.mulf %256, %261 : vector<8x32xf32>
    %263 = arith.truncf %262 : vector<8x32xf32> to vector<8x32xbf16>
    %cst_57 = arith.constant dense<0.000000e+00> : vector<8x256xf32>
    %264 = tpu.matmul %263, %1, %cst_57 {dimension_numbers = #tpu.dot_dimension_numbers<[1], [0], [0], [1], [0, 0, 1, 1], [], []>} : vector<8x32xbf16>, vector<32x256xbf16>, vector<8x256xf32> -> vector<8x256xf32>
    %265 = arith.truncf %242 : vector<8x32xf32> to vector<8x32xbf16>
    %cst_58 = arith.constant dense<0.000000e+00> : vector<8x128xf32>
    %266 = tpu.matmul %265, %2, %cst_58 {dimension_numbers = #tpu.dot_dimension_numbers<[1], [0], [0], [1], [0, 0, 1, 1], [], []>} : vector<8x32xbf16>, vector<32x128xbf16>, vector<8x128xf32> -> vector<8x128xf32>
    %267 = vector.extract_strided_slice %264 {offsets = [0, 128], sizes = [8, 128], strides = [1, 1]} : vector<8x256xf32> to vector<8x128xf32>
    %268 = arith.addf %267, %266 : vector<8x128xf32>
    %269 = arith.addf %268, %22 : vector<8x128xf32>
    %270 = arith.negf %269 : vector<8x128xf32>
    %271 = math.exp %270 : vector<8x128xf32>
    %cst_59 = arith.constant 1.000000e+00 : f32
    %272 = vector.broadcast %cst_59 : f32 to vector<8x128xf32>
    %273 = arith.addf %272, %271 : vector<8x128xf32>
    %274 = arith.divf %272, %273 : vector<8x128xf32>
    %275 = arith.mulf %274, %17 : vector<8x128xf32>
    %276 = arith.addf %275, %20 : vector<8x128xf32>
    %277 = vector.extract_strided_slice %276 {offsets = [0, 0], sizes = [8, 32], strides = [1, 1]} : vector<8x128xf32> to vector<8x32xf32>
    %278 = vector.extract_strided_slice %276 {offsets = [0, 32], sizes = [8, 32], strides = [1, 1]} : vector<8x128xf32> to vector<8x32xf32>
    %279 = vector.extract_strided_slice %276 {offsets = [0, 64], sizes = [8, 32], strides = [1, 1]} : vector<8x128xf32> to vector<8x32xf32>
    %280 = vector.extract_strided_slice %276 {offsets = [0, 96], sizes = [8, 32], strides = [1, 1]} : vector<8x128xf32> to vector<8x32xf32>
    %281 = arith.mulf %278, %240 : vector<8x32xf32>
    %282 = arith.mulf %277, %280 : vector<8x32xf32>
    %283 = arith.addf %281, %282 : vector<8x32xf32>
    %284 = math.tanh %283 : vector<8x32xf32>
    %285 = arith.mulf %279, %284 : vector<8x32xf32>
    %c40_60 = arith.constant 40 : index
    %c0_61 = arith.constant 0 : index
    %286 = vector.load %arg5[%c40_60, %c0_61] : memref<64x32xf32, #tpu.memory_space<vmem>>, vector<8x32xf32>
    tpu.vector_store %arg5[%c40_60, %c0_61], %285 {strides = array<i32>} : memref<64x32xf32, #tpu.memory_space<vmem>>, vector<8x32xf32>,
    %c48_62 = arith.constant 48 : index
    %c0_63 = arith.constant 0 : index
    %287 = vector.load %arg4[%c48_62, %c0_63] : memref<64x128xf32, #tpu.memory_space<vmem>>, vector<8x128xf32>
    %288 = vector.extract_strided_slice %264 {offsets = [0, 0], sizes = [8, 128], strides = [1, 1]} : vector<8x256xf32> to vector<8x128xf32>
    %289 = arith.addf %287, %288 : vector<8x128xf32>
    %290 = arith.negf %289 : vector<8x128xf32>
    %291 = math.exp %290 : vector<8x128xf32>
    %cst_64 = arith.constant 1.000000e+00 : f32
    %292 = vector.broadcast %cst_64 : f32 to vector<8x128xf32>
    %293 = arith.addf %292, %291 : vector<8x128xf32>
    %294 = arith.divf %292, %293 : vector<8x128xf32>
    %295 = arith.mulf %294, %17 : vector<8x128xf32>
    %296 = arith.addf %295, %20 : vector<8x128xf32>
    %297 = vector.extract_strided_slice %296 {offsets = [0, 0], sizes = [8, 32], strides = [1, 1]} : vector<8x128xf32> to vector<8x32xf32>
    %298 = vector.extract_strided_slice %296 {offsets = [0, 32], sizes = [8, 32], strides = [1, 1]} : vector<8x128xf32> to vector<8x32xf32>
    %299 = vector.extract_strided_slice %296 {offsets = [0, 64], sizes = [8, 32], strides = [1, 1]} : vector<8x128xf32> to vector<8x32xf32>
    %300 = vector.extract_strided_slice %296 {offsets = [0, 96], sizes = [8, 32], strides = [1, 1]} : vector<8x128xf32> to vector<8x32xf32>
    %301 = arith.mulf %298, %260 : vector<8x32xf32>
    %302 = arith.mulf %297, %300 : vector<8x32xf32>
    %303 = arith.addf %301, %302 : vector<8x32xf32>
    %304 = math.tanh %303 : vector<8x32xf32>
    %305 = arith.mulf %299, %304 : vector<8x32xf32>
    %306 = arith.truncf %305 : vector<8x32xf32> to vector<8x32xbf16>
    %cst_65 = arith.constant dense<0.000000e+00> : vector<8x256xf32>
    %307 = tpu.matmul %306, %1, %cst_65 {dimension_numbers = #tpu.dot_dimension_numbers<[1], [0], [0], [1], [0, 0, 1, 1], [], []>} : vector<8x32xbf16>, vector<32x256xbf16>, vector<8x256xf32> -> vector<8x256xf32>
    %308 = arith.truncf %285 : vector<8x32xf32> to vector<8x32xbf16>
    %cst_66 = arith.constant dense<0.000000e+00> : vector<8x128xf32>
    %309 = tpu.matmul %308, %2, %cst_66 {dimension_numbers = #tpu.dot_dimension_numbers<[1], [0], [0], [1], [0, 0, 1, 1], [], []>} : vector<8x32xbf16>, vector<32x128xbf16>, vector<8x128xf32> -> vector<8x128xf32>
    %310 = vector.extract_strided_slice %307 {offsets = [0, 128], sizes = [8, 128], strides = [1, 1]} : vector<8x256xf32> to vector<8x128xf32>
    %311 = arith.addf %310, %309 : vector<8x128xf32>
    %312 = arith.addf %311, %22 : vector<8x128xf32>
    %313 = arith.negf %312 : vector<8x128xf32>
    %314 = math.exp %313 : vector<8x128xf32>
    %cst_67 = arith.constant 1.000000e+00 : f32
    %315 = vector.broadcast %cst_67 : f32 to vector<8x128xf32>
    %316 = arith.addf %315, %314 : vector<8x128xf32>
    %317 = arith.divf %315, %316 : vector<8x128xf32>
    %318 = arith.mulf %317, %17 : vector<8x128xf32>
    %319 = arith.addf %318, %20 : vector<8x128xf32>
    %320 = vector.extract_strided_slice %319 {offsets = [0, 0], sizes = [8, 32], strides = [1, 1]} : vector<8x128xf32> to vector<8x32xf32>
    %321 = vector.extract_strided_slice %319 {offsets = [0, 32], sizes = [8, 32], strides = [1, 1]} : vector<8x128xf32> to vector<8x32xf32>
    %322 = vector.extract_strided_slice %319 {offsets = [0, 64], sizes = [8, 32], strides = [1, 1]} : vector<8x128xf32> to vector<8x32xf32>
    %323 = vector.extract_strided_slice %319 {offsets = [0, 96], sizes = [8, 32], strides = [1, 1]} : vector<8x128xf32> to vector<8x32xf32>
    %324 = arith.mulf %321, %283 : vector<8x32xf32>
    %325 = arith.mulf %320, %323 : vector<8x32xf32>
    %326 = arith.addf %324, %325 : vector<8x32xf32>
    %327 = math.tanh %326 : vector<8x32xf32>
    %328 = arith.mulf %322, %327 : vector<8x32xf32>
    %c48_68 = arith.constant 48 : index
    %c0_69 = arith.constant 0 : index
    %329 = vector.load %arg5[%c48_68, %c0_69] : memref<64x32xf32, #tpu.memory_space<vmem>>, vector<8x32xf32>
    tpu.vector_store %arg5[%c48_68, %c0_69], %328 {strides = array<i32>} : memref<64x32xf32, #tpu.memory_space<vmem>>, vector<8x32xf32>,
    %c56 = arith.constant 56 : index
    %c0_70 = arith.constant 0 : index
    %330 = vector.load %arg4[%c56, %c0_70] : memref<64x128xf32, #tpu.memory_space<vmem>>, vector<8x128xf32>
    %331 = vector.extract_strided_slice %307 {offsets = [0, 0], sizes = [8, 128], strides = [1, 1]} : vector<8x256xf32> to vector<8x128xf32>
    %332 = arith.addf %330, %331 : vector<8x128xf32>
    %333 = arith.negf %332 : vector<8x128xf32>
    %334 = math.exp %333 : vector<8x128xf32>
    %cst_71 = arith.constant 1.000000e+00 : f32
    %335 = vector.broadcast %cst_71 : f32 to vector<8x128xf32>
    %336 = arith.addf %335, %334 : vector<8x128xf32>
    %337 = arith.divf %335, %336 : vector<8x128xf32>
    %338 = arith.mulf %337, %17 : vector<8x128xf32>
    %339 = arith.addf %338, %20 : vector<8x128xf32>
    %340 = vector.extract_strided_slice %339 {offsets = [0, 0], sizes = [8, 32], strides = [1, 1]} : vector<8x128xf32> to vector<8x32xf32>
    %341 = vector.extract_strided_slice %339 {offsets = [0, 32], sizes = [8, 32], strides = [1, 1]} : vector<8x128xf32> to vector<8x32xf32>
    %342 = vector.extract_strided_slice %339 {offsets = [0, 64], sizes = [8, 32], strides = [1, 1]} : vector<8x128xf32> to vector<8x32xf32>
    %343 = vector.extract_strided_slice %339 {offsets = [0, 96], sizes = [8, 32], strides = [1, 1]} : vector<8x128xf32> to vector<8x32xf32>
    %344 = arith.mulf %341, %303 : vector<8x32xf32>
    %345 = arith.mulf %340, %343 : vector<8x32xf32>
    %346 = arith.addf %344, %345 : vector<8x32xf32>
    %347 = math.tanh %346 : vector<8x32xf32>
    %348 = arith.mulf %342, %347 : vector<8x32xf32>
    %349 = arith.truncf %348 : vector<8x32xf32> to vector<8x32xbf16>
    %cst_72 = arith.constant dense<0.000000e+00> : vector<8x256xf32>
    %350 = tpu.matmul %349, %1, %cst_72 {dimension_numbers = #tpu.dot_dimension_numbers<[1], [0], [0], [1], [0, 0, 1, 1], [], []>} : vector<8x32xbf16>, vector<32x256xbf16>, vector<8x256xf32> -> vector<8x256xf32>
    %351 = arith.truncf %328 : vector<8x32xf32> to vector<8x32xbf16>
    %cst_73 = arith.constant dense<0.000000e+00> : vector<8x128xf32>
    %352 = tpu.matmul %351, %2, %cst_73 {dimension_numbers = #tpu.dot_dimension_numbers<[1], [0], [0], [1], [0, 0, 1, 1], [], []>} : vector<8x32xbf16>, vector<32x128xbf16>, vector<8x128xf32> -> vector<8x128xf32>
    %353 = vector.extract_strided_slice %350 {offsets = [0, 128], sizes = [8, 128], strides = [1, 1]} : vector<8x256xf32> to vector<8x128xf32>
    %354 = arith.addf %353, %352 : vector<8x128xf32>
    %355 = arith.addf %354, %22 : vector<8x128xf32>
    %356 = arith.negf %355 : vector<8x128xf32>
    %357 = math.exp %356 : vector<8x128xf32>
    %cst_74 = arith.constant 1.000000e+00 : f32
    %358 = vector.broadcast %cst_74 : f32 to vector<8x128xf32>
    %359 = arith.addf %358, %357 : vector<8x128xf32>
    %360 = arith.divf %358, %359 : vector<8x128xf32>
    %361 = arith.mulf %360, %17 : vector<8x128xf32>
    %362 = arith.addf %361, %20 : vector<8x128xf32>
    %363 = vector.extract_strided_slice %362 {offsets = [0, 0], sizes = [8, 32], strides = [1, 1]} : vector<8x128xf32> to vector<8x32xf32>
    %364 = vector.extract_strided_slice %362 {offsets = [0, 32], sizes = [8, 32], strides = [1, 1]} : vector<8x128xf32> to vector<8x32xf32>
    %365 = vector.extract_strided_slice %362 {offsets = [0, 64], sizes = [8, 32], strides = [1, 1]} : vector<8x128xf32> to vector<8x32xf32>
    %366 = vector.extract_strided_slice %362 {offsets = [0, 96], sizes = [8, 32], strides = [1, 1]} : vector<8x128xf32> to vector<8x32xf32>
    %367 = arith.mulf %364, %326 : vector<8x32xf32>
    %368 = arith.mulf %363, %366 : vector<8x32xf32>
    %369 = arith.addf %367, %368 : vector<8x32xf32>
    %370 = math.tanh %369 : vector<8x32xf32>
    %371 = arith.mulf %365, %370 : vector<8x32xf32>
    %c56_75 = arith.constant 56 : index
    %c0_76 = arith.constant 0 : index
    %372 = vector.load %arg5[%c56_75, %c0_76] : memref<64x32xf32, #tpu.memory_space<vmem>>, vector<8x32xf32>
    tpu.vector_store %arg5[%c56_75, %c0_76], %371 {strides = array<i32>} : memref<64x32xf32, #tpu.memory_space<vmem>>, vector<8x32xf32>,
    %c0_77 = arith.constant 0 : index
    %c0_78 = arith.constant 0 : index
    %373 = vector.load %arg5[%c0_77, %c0_78] : memref<64x32xf32, #tpu.memory_space<vmem>>, vector<64x32xf32>
    %374 = arith.truncf %373 : vector<64x32xf32> to vector<64x32xbf16>
    %cst_79 = arith.constant dense<0.000000e+00> : vector<64x128xf32>
    %375 = tpu.matmul %374, %3, %cst_79 {dimension_numbers = #tpu.dot_dimension_numbers<[1], [0], [0], [1], [0, 0, 1, 1], [], []>} : vector<64x32xbf16>, vector<32x128xbf16>, vector<64x128xf32> -> vector<64x128xf32>
    %376 = vector.extract_strided_slice %375 {offsets = [0, 0], sizes = [64, 32], strides = [1, 1]} : vector<64x128xf32> to vector<64x32xf32>
    %377 = vector.broadcast %8 : vector<1x32xf32> to vector<64x32xf32>
    %378 = arith.addf %376, %377 : vector<64x32xf32>
    %379 = math.tanh %378 : vector<64x32xf32>
    %380 = vector.broadcast %10 : vector<1x32xf32> to vector<64x32xf32>
    %381 = arith.mulf %379, %380 : vector<64x32xf32>
    %cst_80 = arith.constant dense<0.000000e+00> : vector<64xf32>
    %382 = vector.multi_reduction <add>, %381, %cst_80 [1] : vector<64x32xf32> to vector<64xf32>
    %383 = vector.shape_cast %382 : vector<64xf32> to vector<64x1xf32>
    %384 = vector.broadcast %9 : vector<1x1xf32> to vector<64x1xf32>
    %385 = arith.addf %383, %384 : vector<64x1xf32>
    %386 = vector.shape_cast %385 : vector<64x1xf32> to vector<8x8x1xf32>
    %cst_81 = arith.constant dense<0xFF800000> : vector<8x1xf32>
    %387 = vector.multi_reduction <maximumf>, %386, %cst_81 [0] : vector<8x8x1xf32> to vector<8x1xf32>
    %388 = vector.shape_cast %387 : vector<8x1xf32> to vector<1x8x1xf32>
    %389 = vector.broadcast %388 : vector<1x8x1xf32> to vector<8x8x1xf32>
    %390 = arith.subf %386, %389 : vector<8x8x1xf32>
    %391 = math.exp %390 : vector<8x8x1xf32>
    %cst_82 = arith.constant dense<0.000000e+00> : vector<8x1xf32>
    %392 = vector.multi_reduction <add>, %391, %cst_82 [0] : vector<8x8x1xf32> to vector<8x1xf32>
    %393 = vector.shape_cast %392 : vector<8x1xf32> to vector<1x8x1xf32>
    %394 = vector.broadcast %393 : vector<1x8x1xf32> to vector<8x8x1xf32>
    %395 = arith.divf %391, %394 : vector<8x8x1xf32>
    %396 = vector.shape_cast %373 : vector<64x32xf32> to vector<8x8x32xf32>
    %397 = vector.broadcast %395 : vector<8x8x1xf32> to vector<8x8x32xf32>
    %398 = arith.mulf %396, %397 : vector<8x8x32xf32>
    %cst_83 = arith.constant dense<0.000000e+00> : vector<8x32xf32>
    %399 = vector.multi_reduction <add>, %398, %cst_83 [0] : vector<8x8x32xf32> to vector<8x32xf32>
    %400 = arith.truncf %399 : vector<8x32xf32> to vector<8x32xbf16>
    %cst_84 = arith.constant dense<0.000000e+00> : vector<8x128xf32>
    %401 = tpu.matmul %400, %4, %cst_84 {dimension_numbers = #tpu.dot_dimension_numbers<[1], [0], [0], [1], [0, 0, 1, 1], [], []>} : vector<8x32xbf16>, vector<32x128xbf16>, vector<8x128xf32> -> vector<8x128xf32>
    %402 = vector.broadcast %11 : vector<1x128xf32> to vector<8x128xf32>
    %403 = arith.addf %401, %402 : vector<8x128xf32>
    %c0_85 = arith.constant 0 : index
    %c0_86 = arith.constant 0 : index
    %404 = vector.load %arg3[%c0_85, %c0_86] : memref<8x128xf32, #tpu.memory_space<vmem>>, vector<8x128xf32>
    tpu.vector_store %arg3[%c0_85, %c0_86], %403 {strides = array<i32>} : memref<8x128xf32, #tpu.memory_space<vmem>>, vector<8x128xf32>,
    return
  }
}

</mosaic_0001>

<llo_original>
// kernel: tpu_custom_call.1
$region0: #{tpu_custom_call.1}
  #allocation0 [shape = 'u32[]', space=smem, size = 0x4, offset = 0x4, fixed_abs, tag = 'smem constant byte address 0x4 - core index']
  #allocation1 [shape = 'u32[72,128]{1,0:T(1,128)}', space=vmem, size = 0x9000, scoped, tag = 'internal scratch']
  #allocation2 [shape = 'f32[64,128]{1,0:T(8,128)}', space=vmem, size = 0x8000, scoped, tag = 'scratch operand']
  #allocation3 [shape = 'f32[64,32]{1,0:T(8,128)}', space=vmem, size = 0x8000, scoped, tag = 'scratch operand']
  %s0 = inlined_call_operand.vmem [shape: bf16[64,16], index: 0, kind: input, shape index: {}]
  %s1 = inlined_call_operand.hbm [shape: bf16[144,256], index: 1, kind: input, shape index: {}]
  %s2 = inlined_call_operand.vmem [shape: f32[8,256], index: 2, kind: input, shape index: {}]
  %s3 = inlined_call_operand.hbm [shape: f32[8,128], index: 3, kind: output, shape index: {}]
  %s4 = sld [smem:[#allocation0]]
  $region26: #{tpu_custom_call.1} parent=0
    _
  %s6 = ssub.s32 1, %s4
  %s7 = scalar_select 0, %s6, %s4
  $region1: #{tpu_custom_call.1} parent=0
    #allocation4 [shape = 'u8[73728]{0}', space=vmem, size = 0x12000, scoped, tag = 'input window, operand 1, single buffered']
    #allocation5 [shape = 's32[1]{0}', space=sflag, size = 0x4, scoped, tag = 'scoped memory for tpu_custom_call.1']
    #allocation6 [shape = 's32[1]{0}', space=sflag, size = 0x4, scoped, tag = 'scoped memory for tpu_custom_call.1']
    #allocation7 [shape = 'u8[4096]{0}', space=vmem, size = 0x1000, scoped, tag = 'output window, operand 0, single buffered']
    %8 = vsyncpa [#allocation5], 0
    %9 = vsyncpa [#allocation6], 0
    // Predicated region
    $region2: #{tpu_custom_call.1} parent=1 // pred_check
      _
    $region3: #{tpu_custom_call.1} parent=1 // pred_check_branch
      %11 = sbr.rel (0) target = $region5
    $region4: #{tpu_custom_call.1} parent=1 // pred_region
      _
    $region5: #{tpu_custom_call.1} parent=1 // pred_fallthru
      _
    // Predicated region
    $region6: #{tpu_custom_call.1} parent=1 // pred_check
      _
    $region7: #{tpu_custom_call.1} parent=1 // pred_check_branch
      %13 = sbr.rel (0) target = $region9
    $region8: #{tpu_custom_call.1} parent=1 // pred_region
      %15 = vsyncadd [#allocation5], 0
      %s16 = sshll.u32 %s1, 4
      %s17 = int_to_ptr.hbm [resolvable:$true] %s16
      %s18 = sshll.u32 [#allocation4], 4
      %s19 = int_to_ptr.vmem [resolvable:$true] %s18
      %24 = dma.hbm_to_vmem [thread:$0]  %s17, 2304, %s19, [#allocation5], 128, 128, 8
    $region9: #{tpu_custom_call.1} parent=1 // pred_fallthru
      _
    // Predicated region
    $region10: #{tpu_custom_call.1} parent=1 // pred_check
      _
    $region11: #{tpu_custom_call.1} parent=1 // pred_check_branch
      %26 = sbr.rel (0) target = $region13
    $region12: #{tpu_custom_call.1} parent=1 // pred_region
      _
    $region13: #{tpu_custom_call.1} parent=1 // pred_fallthru
      _
    // Predicated region
    $region14: #{tpu_custom_call.1} parent=1 // pred_check
      _
    $region15: #{tpu_custom_call.1} parent=1 // pred_check_branch
      %28 = sbr.rel (0) target = $region17
    $region16: #{tpu_custom_call.1} parent=1 // pred_region
      %30 = dma.done [#allocation5], 2304
    $region17: #{tpu_custom_call.1} parent=1 // pred_fallthru
      _
    %v32 = vld [vmem:[#allocation4] sm:$0xf]
    %v33 = vld [vmem:[#allocation4 + $0x8] sm:$0xf]
    %v34 = vld [vmem:[#allocation4 + $0x10] sm:$0xff]
    %v35 = vld [vmem:[#allocation4 + $0x18] sm:$0xff]
    %v36 = vld [vmem:[#allocation4 + $0x20] sm:$0xff]
    %v37 = vld [vmem:[#allocation4 + $0x28] sm:$0xff]
    %v38 = vld [vmem:[#allocation4 + $0x30] sm:$0xf]
    %v39 = vld [vmem:[#allocation4 + $0x38] sm:$0xf]
    %v40 = vld [vmem:[#allocation4 + $0x40] sm:$0xf]
    %v41 = vld [vmem:[#allocation4 + $0x48] sm:$0xf]
    %v42 = vld [vmem:[#allocation4 + $0x50] sm:$0xf]
    %v43 = vld [vmem:[#allocation4 + $0x58] sm:$0xf]
    %v44 = vld [vmem:[#allocation4 + $0x60] sm:$0xf]
    %v45 = vld [vmem:[#allocation4 + $0x68] sm:$0xf]
    %v46 = vld [vmem:[#allocation4 + $0x70] sm:$0xf]
    %v47 = vld [vmem:[#allocation4 + $0x78] sm:$0xf]
    %v48 = vld [vmem:[#allocation4 + $0x80] sm:$0xf]
    %v49 = vld [vmem:[#allocation4 + $0x88] sm:$0xf]
    %v50 = vld [vmem:[%s2] sm:$0xff]
    %v51 = vlaneseq
    %v52 = vand.u32 %v51, 127
    %vm53 = vcmp.ge.s32.totalorder %v52, 96
    %v54 = vsel %vm53, 2.0, 1.0
    %v55 = vsel %vm53, -1.0, 0.0
    %v56 = vperm.slane %v50, 1
    %v57 = vld [vmem:[%s0] sm:$0xf]
    %v58 = vld [vmem:[%s0 + $0x4] sm:$0xf]
    %v59 = vld [vmem:[%s0 + $0x8] sm:$0xf]
    %v60 = vld [vmem:[%s0 + $0xc] sm:$0xf]
    %v61 = vld [vmem:[%s0 + $0x10] sm:$0xf]
    %v62 = vld [vmem:[%s0 + $0x14] sm:$0xf]
    %v63 = vld [vmem:[%s0 + $0x18] sm:$0xf]
    %v64 = vld [vmem:[%s0 + $0x1c] sm:$0xf]
    %v65 = vperm.slane %v50, 0
    %v74 = vunpack.c.l.b16 %v57
    %v75 = vunpack.c.l.b16 %v58
    %v76 = vunpack.c.l.b16 %v59
    %v77 = vunpack.c.l.b16 %v60
    %v78 = vunpack.c.l.b16 %v61
    %v79 = vunpack.c.l.b16 %v62
    %v80 = vunpack.c.l.b16 %v63
    %v81 = vunpack.c.l.b16 %v64
    %v82 = vpack.c.b16 %v75, %v74
    %v83 = vpack.c.b16 %v77, %v76
    %v84 = vpack.c.b16 %v79, %v78
    %v85 = vpack.c.b16 %v81, %v80
    %v88 = vunpack.c.l.b16 %v32
    %v89 = vunpack.c.l.b16 %v33
    %v90 = vpack.c.b16 %v89, %v88
    %vm92 = vcmask 130048
    %v94 = vsel %vm92, %v82, 0
    %v97 = vsel %vm92, %v83, 0
    %v100 = vsel %vm92, %v84, 0
    %v103 = vsel %vm92, %v85, 0
    %105 = vmatpush.bf16.msra.mxu0 0
    %106 = vmatpush.bf16.msra.mxu0 0
    %107 = vmatpush.bf16.msra.mxu0 0
    %108 = vmatpush.bf16.msra.mxu0 0
    %109 = vmatpush.bf16.msra.mxu0 0
    %110 = vmatpush.bf16.msra.mxu0 0
    %111 = vmatpush.bf16.msra.mxu0 0
    %112 = vmatpush.bf16.msra.mxu0 %v90
    %113 = vmatmul.bf16.gmra.mxu0 %v94
    %v114 = vpop.f32.mrf.mxu0
    %v115 = vadd.f32 %v65, %v114
    %v116 = vpop.f32.mrf.mxu0
    %v117 = vadd.f32 %v65, %v116
    %118 = vmatmul.bf16.gmra.mxu0 %v97
    %v119 = vpop.f32.mrf.mxu0
    %v120 = vadd.f32 %v65, %v119
    %v121 = vpop.f32.mrf.mxu0
    %v122 = vadd.f32 %v65, %v121
    %123 = vmatmul.bf16.gmra.mxu0 %v100
    %v124 = vpop.f32.mrf.mxu0
    %v125 = vadd.f32 %v65, %v124
    %v126 = vpop.f32.mrf.mxu0
    %v127 = vadd.f32 %v65, %v126
    %128 = vmatmul.bf16.gmra.mxu0 %v103
    %v129 = vpop.f32.mrf.mxu0
    %v130 = vadd.f32 %v65, %v129
    %v131 = vpop.f32.mrf.mxu0
    %v132 = vadd.f32 %v65, %v131
    %133 = vdwg.mxu0
    %134 = vst [vmem:[#allocation2] sm:$0xff] %v115
    %135 = vst [vmem:[#allocation2 + $0x8] sm:$0xff] %v117
    %136 = vst [vmem:[#allocation2 + $0x10] sm:$0xff] %v120
    %137 = vst [vmem:[#allocation2 + $0x18] sm:$0xff] %v122
    %138 = vst [vmem:[#allocation2 + $0x20] sm:$0xff] %v125
    %139 = vst [vmem:[#allocation2 + $0x28] sm:$0xff] %v127
    %140 = vst [vmem:[#allocation2 + $0x30] sm:$0xff] %v130
    %141 = vst [vmem:[#allocation2 + $0x38] sm:$0xff] %v132
    %v142 = vld [vmem:[#allocation2] sm:$0xff]
    %v143 = vxor.u32 %v142, 2147483648
    %v144 = vmul.f32 %v143, 1.442695
    %v145 = vpow.pop %v144
    %v146 = vadd.f32 %v145, 1.0
    %v147 = vrcp.pop %v146
    %v148 = vmul.f32 %v146, %v147
    %v149 = vsub.f32 1.0, %v148
    %v150 = vmul.f32 %v147, %v149
    %v151 = vadd.f32 %v147, %v150
    %vm152 = vweird.f32 %v146
    %vm153 = vweird.f32 %v147
    %vm154 = vmor %vm152, %vm153
    %v155 = vsel %vm154, %v147, %v151
    %v156 = vand.u32 2147483647, %v146
    %vm157 = vcmp.eq.f32.partialorder %v156, 8.507059e+37
    %v158 = vand.u32 %v146, 2147483648
    %v159 = vor.u32 1.1754944e-38, %v158
    %v160 = vsel %vm157, %v159, %v155
    %v161 = vmul.f32 1.0, %v160
    %v162 = vmul.f32 %v161, %v54
    %v163 = vadd.f32 %v162, %v55
    %v164 = vmul.f32 %v163, 0.0
    %166 = vrot.lane.b32.xlu0 %v163, 32
    %v167 = vpop.permute.xlu0 %166
    %v169 = vmul.f32 %v163, %v167
    %171 = vrot.lane.b32.xlu0 %v169, 32
    %v172 = vpop.permute.xlu0 %171
    %v174 = vadd.f32 %v164, %v172
    %v175 = vtanh.pop %v174
    %177 = vrot.lane.b32.xlu0 %v175, 32
    %v178 = vpop.permute.xlu0 %177
    %v180 = vmul.f32 %v163, %v178
    %v181 = vpack.c.bf16 %v180, %v180
    %183 = vrot.lane.b32.xlu0 %v181, 64
    %v184 = vpop.permute.xlu0 %183
    %v189 = vunpack.c.l.b16 %v34
    %v190 = vunpack.c.h.b16 %v34
    %v191 = vunpack.c.l.b16 %v35
    %v192 = vunpack.c.h.b16 %v35
    %v193 = vunpack.c.l.b16 %v36
    %v194 = vunpack.c.h.b16 %v36
    %v195 = vunpack.c.l.b16 %v37
    %v196 = vunpack.c.h.b16 %v37
    %v197 = vpack.c.b16 %v191, %v189
    %v198 = vpack.c.b16 %v192, %v190
    %v199 = vpack.c.b16 %v195, %v193
    %v200 = vpack.c.b16 %v196, %v194
    %vm205 = vcmask 261120
    %v207 = vsel %vm205, %v184, 0
    %209 = vmatpush.bf16.msra.mxu0 0
    %210 = vmatpush.bf16.msra.mxu0 0
    %211 = vmatpush.bf16.msra.mxu0 0
    %212 = vmatpush.bf16.msra.mxu0 0
    %213 = vmatpush.bf16.msra.mxu0 0
    %214 = vmatpush.bf16.msra.mxu0 0
    %215 = vmatpush.bf16.msra.mxu0 %v199
    %216 = vmatpush.bf16.msra.mxu0 %v197
    %217 = vmatmul.bf16.gmra.mxu0 %v207
    %v218 = vpop.f32.mrf.mxu0
    %v219 = vadd.f32 0.0, %v218
    %v220 = vpop.f32.mrf.mxu0
    %221 = vdwg.mxu0
    %222 = vmatpush.bf16.msra.mxu0 0
    %223 = vmatpush.bf16.msra.mxu0 0
    %224 = vmatpush.bf16.msra.mxu0 0
    %225 = vmatpush.bf16.msra.mxu0 0
    %226 = vmatpush.bf16.msra.mxu0 0
    %227 = vmatpush.bf16.msra.mxu0 0
    %228 = vmatpush.bf16.msra.mxu0 %v200
    %229 = vmatpush.bf16.msra.mxu0 %v198
    %230 = vmatmul.bf16.gmra.mxu0 %v207
    %v231 = vpop.f32.mrf.mxu0
    %v232 = vadd.f32 0.0, %v231
    %v233 = vpop.f32.mrf.mxu0
    %234 = vdwg.mxu0
    %v239 = vunpack.c.l.b16 %v38
    %v240 = vunpack.c.l.b16 %v39
    %v241 = vunpack.c.l.b16 %v40
    %v242 = vunpack.c.l.b16 %v41
    %v243 = vpack.c.b16 %v240, %v239
    %v244 = vpack.c.b16 %v242, %v241
    %v248 = vsel %vm205, 0, 0
    %250 = vmatpush.bf16.msra.mxu0 0
    %251 = vmatpush.bf16.msra.mxu0 0
    %252 = vmatpush.bf16.msra.mxu0 0
    %253 = vmatpush.bf16.msra.mxu0 0
    %254 = vmatpush.bf16.msra.mxu0 0
    %255 = vmatpush.bf16.msra.mxu0 0
    %256 = vmatpush.bf16.msra.mxu0 %v244
    %257 = vmatpush.bf16.msra.mxu0 %v243
    %258 = vmatmul.bf16.gmra.mxu0 %v248
    %v259 = vpop.f32.mrf.mxu0
    %v260 = vadd.f32 0.0, %v259
    %v261 = vpop.f32.mrf.mxu0
    %262 = vdwg.mxu0
    %v263 = vadd.f32 %v232, %v260
    %v264 = vadd.f32 %v263, %v56
    %v265 = vxor.u32 %v264, 2147483648
    %v266 = vmul.f32 %v265, 1.442695
    %v267 = vpow.pop %v266
    %v268 = vadd.f32 %v267, 1.0
    %v269 = vrcp.pop %v268
    %v270 = vmul.f32 %v268, %v269
    %v271 = vsub.f32 1.0, %v270
    %v272 = vmul.f32 %v269, %v271
    %v273 = vadd.f32 %v269, %v272
    %vm274 = vweird.f32 %v268
    %vm275 = vweird.f32 %v269
    %vm276 = vmor %vm274, %vm275
    %v277 = vsel %vm276, %v269, %v273
    %v278 = vand.u32 2147483647, %v268
    %vm279 = vcmp.eq.f32.partialorder %v278, 8.507059e+37
    %v280 = vand.u32 %v268, 2147483648
    %v281 = vor.u32 1.1754944e-38, %v280
    %v282 = vsel %vm279, %v281, %v277
    %v283 = vmul.f32 1.0, %v282
    %v284 = vmul.f32 %v283, %v54
    %v285 = vadd.f32 %v284, %v55
    %v286 = vmul.f32 %v285, 0.0
    %288 = vrot.lane.b32.xlu0 %v285, 32
    %v289 = vpop.permute.xlu0 %288
    %v291 = vmul.f32 %v285, %v289
    %293 = vrot.lane.b32.xlu0 %v291, 32
    %v294 = vpop.permute.xlu0 %293
    %v296 = vadd.f32 %v286, %v294
    %v297 = vtanh.pop %v296
    %299 = vrot.lane.b32.xlu0 %v297, 32
    %v300 = vpop.permute.xlu0 %299
    %v302 = vmul.f32 %v285, %v300
    %304 = vrot.lane.b32.xlu0 %v302, 64
    %v305 = vpop.permute.xlu0 %304
    %307 = vst.msk [vmem:[#allocation3] sm:$0xff] %vm205, %v305
    %v308 = vld [vmem:[#allocation2 + $0x8] sm:$0xff]
    %v309 = vadd.f32 %v308, %v219
    %v310 = vxor.u32 %v309, 2147483648
    %v311 = vmul.f32 %v310, 1.442695
    %v312 = vpow.pop %v311
    %v313 = vadd.f32 %v312, 1.0
    %v314 = vrcp.pop %v313
    %v315 = vmul.f32 %v313, %v314
    %v316 = vsub.f32 1.0, %v315
    %v317 = vmul.f32 %v314, %v316
    %v318 = vadd.f32 %v314, %v317
    %vm319 = vweird.f32 %v313
    %vm320 = vweird.f32 %v314
    %vm321 = vmor %vm319, %vm320
    %v322 = vsel %vm321, %v314, %v318
    %v323 = vand.u32 2147483647, %v313
    %vm324 = vcmp.eq.f32.partialorder %v323, 8.507059e+37
    %v325 = vand.u32 %v313, 2147483648
    %v326 = vor.u32 1.1754944e-38, %v325
    %v327 = vsel %vm324, %v326, %v322
    %v328 = vmul.f32 1.0, %v327
    %v329 = vmul.f32 %v328, %v54
    %v330 = vadd.f32 %v329, %v55
    %v331 = vmul.f32 %v330, %v174
    %333 = vrot.lane.b32.xlu0 %v330, 32
    %v334 = vpop.permute.xlu0 %333
    %v336 = vmul.f32 %v330, %v334
    %338 = vrot.lane.b32.xlu0 %v336, 32
    %v339 = vpop.permute.xlu0 %338
    %v341 = vadd.f32 %v331, %v339
    %v342 = vtanh.pop %v341
    %344 = vrot.lane.b32.xlu0 %v342, 32
    %v345 = vpop.permute.xlu0 %344
    %v347 = vmul.f32 %v330, %v345
    %v348 = vpack.c.bf16 %v347, %v347
    %350 = vrot.lane.b32.xlu0 %v348, 64
    %v351 = vpop.permute.xlu0 %350
    %v353 = vsel %vm205, %v351, 0
    %355 = vmatpush.bf16.msra.mxu0 0
    %356 = vmatpush.bf16.msra.mxu0 0
    %357 = vmatpush.bf16.msra.mxu0 0
    %358 = vmatpush.bf16.msra.mxu0 0
    %359 = vmatpush.bf16.msra.mxu0 0
    %360 = vmatpush.bf16.msra.mxu0 0
    %361 = vmatpush.bf16.msra.mxu0 %v199
    %362 = vmatpush.bf16.msra.mxu0 %v197
    %363 = vmatmul.bf16.gmra.mxu0 %v353
    %v364 = vpop.f32.mrf.mxu0
    %v365 = vadd.f32 0.0, %v364
    %v366 = vpop.f32.mrf.mxu0
    %367 = vdwg.mxu0
    %368 = vmatpush.bf16.msra.mxu0 0
    %369 = vmatpush.bf16.msra.mxu0 0
    %370 = vmatpush.bf16.msra.mxu0 0
    %371 = vmatpush.bf16.msra.mxu0 0
    %372 = vmatpush.bf16.msra.mxu0 0
    %373 = vmatpush.bf16.msra.mxu0 0
    %374 = vmatpush.bf16.msra.mxu0 %v200
    %375 = vmatpush.bf16.msra.mxu0 %v198
    %376 = vmatmul.bf16.gmra.mxu0 %v353
    %v377 = vpop.f32.mrf.mxu0
    %v378 = vadd.f32 0.0, %v377
    %v379 = vpop.f32.mrf.mxu0
    %380 = vdwg.mxu0
    %v381 = vpack.c.bf16 %v302, %v302
    %383 = vrot.lane.b32.xlu0 %v381, 64
    %v384 = vpop.permute.xlu0 %383
    %v386 = vsel %vm205, %v384, 0
    %388 = vmatpush.bf16.msra.mxu0 0
    %389 = vmatpush.bf16.msra.mxu0 0
    %390 = vmatpush.bf16.msra.mxu0 0
    %391 = vmatpush.bf16.msra.mxu0 0
    %392 = vmatpush.bf16.msra.mxu0 0
    %393 = vmatpush.bf16.msra.mxu0 0
    %394 = vmatpush.bf16.msra.mxu0 %v244
    %395 = vmatpush.bf16.msra.mxu0 %v243
    %396 = vmatmul.bf16.gmra.mxu0 %v386
    %v397 = vpop.f32.mrf.mxu0
    %v398 = vadd.f32 0.0, %v397
    %v399 = vpop.f32.mrf.mxu0
    %400 = vdwg.mxu0
    %v401 = vadd.f32 %v378, %v398
    %v402 = vadd.f32 %v401, %v56
    %v403 = vxor.u32 %v402, 2147483648
    %v404 = vmul.f32 %v403, 1.442695
    %v405 = vpow.pop %v404
    %v406 = vadd.f32 %v405, 1.0
    %v407 = vrcp.pop %v406
    %v408 = vmul.f32 %v406, %v407
    %v409 = vsub.f32 1.0, %v408
    %v410 = vmul.f32 %v407, %v409
    %v411 = vadd.f32 %v407, %v410
    %vm412 = vweird.f32 %v406
    %vm413 = vweird.f32 %v407
    %vm414 = vmor %vm412, %vm413
    %v415 = vsel %vm414, %v407, %v411
    %v416 = vand.u32 2147483647, %v406
    %vm417 = vcmp.eq.f32.partialorder %v416, 8.507059e+37
    %v418 = vand.u32 %v406, 2147483648
    %v419 = vor.u32 1.1754944e-38, %v418
    %v420 = vsel %vm417, %v419, %v415
    %v421 = vmul.f32 1.0, %v420
    %v422 = vmul.f32 %v421, %v54
    %v423 = vadd.f32 %v422, %v55
    %v424 = vmul.f32 %v423, %v296
    %426 = vrot.lane.b32.xlu0 %v423, 32
    %v427 = vpop.permute.xlu0 %426
    %v429 = vmul.f32 %v423, %v427
    %431 = vrot.lane.b32.xlu0 %v429, 32
    %v432 = vpop.permute.xlu0 %431
    %v434 = vadd.f32 %v424, %v432
    %v435 = vtanh.pop %v434
    %437 = vrot.lane.b32.xlu0 %v435, 32
    %v438 = vpop.permute.xlu0 %437
    %v440 = vmul.f32 %v423, %v438
    %442 = vrot.lane.b32.xlu0 %v440, 64
    %v443 = vpop.permute.xlu0 %442
    %445 = vst.msk [vmem:[#allocation3 + $0x8] sm:$0xff] %vm205, %v443
    %v446 = vld [vmem:[#allocation2 + $0x10] sm:$0xff]
    %v447 = vadd.f32 %v446, %v365
    %v448 = vxor.u32 %v447, 2147483648
    %v449 = vmul.f32 %v448, 1.442695
    %v450 = vpow.pop %v449
    %v451 = vadd.f32 %v450, 1.0
    %v452 = vrcp.pop %v451
    %v453 = vmul.f32 %v451, %v452
    %v454 = vsub.f32 1.0, %v453
    %v455 = vmul.f32 %v452, %v454
    %v456 = vadd.f32 %v452, %v455
    %vm457 = vweird.f32 %v451
    %vm458 = vweird.f32 %v452
    %vm459 = vmor %vm457, %vm458
    %v460 = vsel %vm459, %v452, %v456
    %v461 = vand.u32 2147483647, %v451
    %vm462 = vcmp.eq.f32.partialorder %v461, 8.507059e+37
    %v463 = vand.u32 %v451, 2147483648
    %v464 = vor.u32 1.1754944e-38, %v463
    %v465 = vsel %vm462, %v464, %v460
    %v466 = vmul.f32 1.0, %v465
    %v467 = vmul.f32 %v466, %v54
    %v468 = vadd.f32 %v467, %v55
    %v469 = vmul.f32 %v468, %v341
    %471 = vrot.lane.b32.xlu0 %v468, 32
    %v472 = vpop.permute.xlu0 %471
    %v474 = vmul.f32 %v468, %v472
    %476 = vrot.lane.b32.xlu0 %v474, 32
    %v477 = vpop.permute.xlu0 %476
    %v479 = vadd.f32 %v469, %v477
    %v480 = vtanh.pop %v479
    %482 = vrot.lane.b32.xlu0 %v480, 32
    %v483 = vpop.permute.xlu0 %482
    %v485 = vmul.f32 %v468, %v483
    %v486 = vpack.c.bf16 %v485, %v485
    %488 = vrot.lane.b32.xlu0 %v486, 64
    %v489 = vpop.permute.xlu0 %488
    %v491 = vsel %vm205, %v489, 0
    %493 = vmatpush.bf16.msra.mxu0 0
    %494 = vmatpush.bf16.msra.mxu0 0
    %495 = vmatpush.bf16.msra.mxu0 0
    %496 = vmatpush.bf16.msra.mxu0 0
    %497 = vmatpush.bf16.msra.mxu0 0
    %498 = vmatpush.bf16.msra.mxu0 0
    %499 = vmatpush.bf16.msra.mxu0 %v199
    %500 = vmatpush.bf16.msra.mxu0 %v197
    %501 = vmatmul.bf16.gmra.mxu0 %v491
    %v502 = vpop.f32.mrf.mxu0
    %v503 = vadd.f32 0.0, %v502
    %v504 = vpop.f32.mrf.mxu0
    %505 = vdwg.mxu0
    %506 = vmatpush.bf16.msra.mxu0 0
    %507 = vmatpush.bf16.msra.mxu0 0
    %508 = vmatpush.bf16.msra.mxu0 0
    %509 = vmatpush.bf16.msra.mxu0 0
    %510 = vmatpush.bf16.msra.mxu0 0
    %511 = vmatpush.bf16.msra.mxu0 0
    %512 = vmatpush.bf16.msra.mxu0 %v200
    %513 = vmatpush.bf16.msra.mxu0 %v198
    %514 = vmatmul.bf16.gmra.mxu0 %v491
    %v515 = vpop.f32.mrf.mxu0
    %v516 = vadd.f32 0.0, %v515
    %v517 = vpop.f32.mrf.mxu0
    %518 = vdwg.mxu0
    %v519 = vpack.c.bf16 %v440, %v440
    %521 = vrot.lane.b32.xlu0 %v519, 64
    %v522 = vpop.permute.xlu0 %521
    %v524 = vsel %vm205, %v522, 0
    %526 = vmatpush.bf16.msra.mxu0 0
    %527 = vmatpush.bf16.msra.mxu0 0
    %528 = vmatpush.bf16.msra.mxu0 0
    %529 = vmatpush.bf16.msra.mxu0 0
    %530 = vmatpush.bf16.msra.mxu0 0
    %531 = vmatpush.bf16.msra.mxu0 0
    %532 = vmatpush.bf16.msra.mxu0 %v244
    %533 = vmatpush.bf16.msra.mxu0 %v243
    %534 = vmatmul.bf16.gmra.mxu0 %v524
    %v535 = vpop.f32.mrf.mxu0
    %v536 = vadd.f32 0.0, %v535
    %v537 = vpop.f32.mrf.mxu0
    %538 = vdwg.mxu0
    %v539 = vadd.f32 %v516, %v536
    %v540 = vadd.f32 %v539, %v56
    %v541 = vxor.u32 %v540, 2147483648
    %v542 = vmul.f32 %v541, 1.442695
    %v543 = vpow.pop %v542
    %v544 = vadd.f32 %v543, 1.0
    %v545 = vrcp.pop %v544
    %v546 = vmul.f32 %v544, %v545
    %v547 = vsub.f32 1.0, %v546
    %v548 = vmul.f32 %v545, %v547
    %v549 = vadd.f32 %v545, %v548
    %vm550 = vweird.f32 %v544
    %vm551 = vweird.f32 %v545
    %vm552 = vmor %vm550, %vm551
    %v553 = vsel %vm552, %v545, %v549
    %v554 = vand.u32 2147483647, %v544
    %vm555 = vcmp.eq.f32.partialorder %v554, 8.507059e+37
    %v556 = vand.u32 %v544, 2147483648
    %v557 = vor.u32 1.1754944e-38, %v556
    %v558 = vsel %vm555, %v557, %v553
    %v559 = vmul.f32 1.0, %v558
    %v560 = vmul.f32 %v559, %v54
    %v561 = vadd.f32 %v560, %v55
    %v562 = vmul.f32 %v561, %v434
    %564 = vrot.lane.b32.xlu0 %v561, 32
    %v565 = vpop.permute.xlu0 %564
    %v567 = vmul.f32 %v561, %v565
    %569 = vrot.lane.b32.xlu0 %v567, 32
    %v570 = vpop.permute.xlu0 %569
    %v572 = vadd.f32 %v562, %v570
    %v573 = vtanh.pop %v572
    %575 = vrot.lane.b32.xlu0 %v573, 32
    %v576 = vpop.permute.xlu0 %575
    %v578 = vmul.f32 %v561, %v576
    %580 = vrot.lane.b32.xlu0 %v578, 64
    %v581 = vpop.permute.xlu0 %580
    %583 = vst.msk [vmem:[#allocation3 + $0x10] sm:$0xff] %vm205, %v581
    %v584 = vld [vmem:[#allocation2 + $0x18] sm:$0xff]
    %v585 = vadd.f32 %v584, %v503
    %v586 = vxor.u32 %v585, 2147483648
    %v587 = vmul.f32 %v586, 1.442695
    %v588 = vpow.pop %v587
    %v589 = vadd.f32 %v588, 1.0
    %v590 = vrcp.pop %v589
    %v591 = vmul.f32 %v589, %v590
    %v592 = vsub.f32 1.0, %v591
    %v593 = vmul.f32 %v590, %v592
    %v594 = vadd.f32 %v590, %v593
    %vm595 = vweird.f32 %v589
    %vm596 = vweird.f32 %v590
    %vm597 = vmor %vm595, %vm596
    %v598 = vsel %vm597, %v590, %v594
    %v599 = vand.u32 2147483647, %v589
    %vm600 = vcmp.eq.f32.partialorder %v599, 8.507059e+37
    %v601 = vand.u32 %v589, 2147483648
    %v602 = vor.u32 1.1754944e-38, %v601
    %v603 = vsel %vm600, %v602, %v598
    %v604 = vmul.f32 1.0, %v603
    %v605 = vmul.f32 %v604, %v54
    %v606 = vadd.f32 %v605, %v55
    %v607 = vmul.f32 %v606, %v479
    %609 = vrot.lane.b32.xlu0 %v606, 32
    %v610 = vpop.permute.xlu0 %609
    %v612 = vmul.f32 %v606, %v610
    %614 = vrot.lane.b32.xlu0 %v612, 32
    %v615 = vpop.permute.xlu0 %614
    %v617 = vadd.f32 %v607, %v615
    %v618 = vtanh.pop %v617
    %620 = vrot.lane.b32.xlu0 %v618, 32
    %v621 = vpop.permute.xlu0 %620
    %v623 = vmul.f32 %v606, %v621
    %v624 = vpack.c.bf16 %v623, %v623
    %626 = vrot.lane.b32.xlu0 %v624, 64
    %v627 = vpop.permute.xlu0 %626
    %v629 = vsel %vm205, %v627, 0
    %631 = vmatpush.bf16.msra.mxu0 0
    %632 = vmatpush.bf16.msra.mxu0 0
    %633 = vmatpush.bf16.msra.mxu0 0
    %634 = vmatpush.bf16.msra.mxu0 0
    %635 = vmatpush.bf16.msra.mxu0 0
    %636 = vmatpush.bf16.msra.mxu0 0
    %637 = vmatpush.bf16.msra.mxu0 %v199
    %638 = vmatpush.bf16.msra.mxu0 %v197
    %639 = vmatmul.bf16.gmra.mxu0 %v629
    %v640 = vpop.f32.mrf.mxu0
    %v641 = vadd.f32 0.0, %v640
    %v642 = vpop.f32.mrf.mxu0
    %643 = vdwg.mxu0
    %644 = vmatpush.bf16.msra.mxu0 0
    %645 = vmatpush.bf16.msra.mxu0 0
    %646 = vmatpush.bf16.msra.mxu0 0
    %647 = vmatpush.bf16.msra.mxu0 0
    %648 = vmatpush.bf16.msra.mxu0 0
    %649 = vmatpush.bf16.msra.mxu0 0
    %650 = vmatpush.bf16.msra.mxu0 %v200
    %651 = vmatpush.bf16.msra.mxu0 %v198
    %652 = vmatmul.bf16.gmra.mxu0 %v629
    %v653 = vpop.f32.mrf.mxu0
    %v654 = vadd.f32 0.0, %v653
    %v655 = vpop.f32.mrf.mxu0
    %656 = vdwg.mxu0
    %v657 = vpack.c.bf16 %v578, %v578
    %659 = vrot.lane.b32.xlu0 %v657, 64
    %v660 = vpop.permute.xlu0 %659
    %v662 = vsel %vm205, %v660, 0
    %664 = vmatpush.bf16.msra.mxu0 0
    %665 = vmatpush.bf16.msra.mxu0 0
    %666 = vmatpush.bf16.msra.mxu0 0
    %667 = vmatpush.bf16.msra.mxu0 0
    %668 = vmatpush.bf16.msra.mxu0 0
    %669 = vmatpush.bf16.msra.mxu0 0
    %670 = vmatpush.bf16.msra.mxu0 %v244
    %671 = vmatpush.bf16.msra.mxu0 %v243
    %672 = vmatmul.bf16.gmra.mxu0 %v662
    %v673 = vpop.f32.mrf.mxu0
    %v674 = vadd.f32 0.0, %v673
    %v675 = vpop.f32.mrf.mxu0
    %676 = vdwg.mxu0
    %v677 = vadd.f32 %v654, %v674
    %v678 = vadd.f32 %v677, %v56
    %v679 = vxor.u32 %v678, 2147483648
    %v680 = vmul.f32 %v679, 1.442695
    %v681 = vpow.pop %v680
    %v682 = vadd.f32 %v681, 1.0
    %v683 = vrcp.pop %v682
    %v684 = vmul.f32 %v682, %v683
    %v685 = vsub.f32 1.0, %v684
    %v686 = vmul.f32 %v683, %v685
    %v687 = vadd.f32 %v683, %v686
    %vm688 = vweird.f32 %v682
    %vm689 = vweird.f32 %v683
    %vm690 = vmor %vm688, %vm689
    %v691 = vsel %vm690, %v683, %v687
    %v692 = vand.u32 2147483647, %v682
    %vm693 = vcmp.eq.f32.partialorder %v692, 8.507059e+37
    %v694 = vand.u32 %v682, 2147483648
    %v695 = vor.u32 1.1754944e-38, %v694
    %v696 = vsel %vm693, %v695, %v691
    %v697 = vmul.f32 1.0, %v696
    %v698 = vmul.f32 %v697, %v54
    %v699 = vadd.f32 %v698, %v55
    %v700 = vmul.f32 %v699, %v572
    %702 = vrot.lane.b32.xlu0 %v699, 32
    %v703 = vpop.permute.xlu0 %702
    %v705 = vmul.f32 %v699, %v703
    %707 = vrot.lane.b32.xlu0 %v705, 32
    %v708 = vpop.permute.xlu0 %707
    %v710 = vadd.f32 %v700, %v708
    %v711 = vtanh.pop %v710
    %713 = vrot.lane.b32.xlu0 %v711, 32
    %v714 = vpop.permute.xlu0 %713
    %v716 = vmul.f32 %v699, %v714
    %718 = vrot.lane.b32.xlu0 %v716, 64
    %v719 = vpop.permute.xlu0 %718
    %721 = vst.msk [vmem:[#allocation3 + $0x18] sm:$0xff] %vm205, %v719
    %v722 = vld [vmem:[#allocation2 + $0x20] sm:$0xff]
    %v723 = vadd.f32 %v722, %v641
    %v724 = vxor.u32 %v723, 2147483648
    %v725 = vmul.f32 %v724, 1.442695
    %v726 = vpow.pop %v725
    %v727 = vadd.f32 %v726, 1.0
    %v728 = vrcp.pop %v727
    %v729 = vmul.f32 %v727, %v728
    %v730 = vsub.f32 1.0, %v729
    %v731 = vmul.f32 %v728, %v730
    %v732 = vadd.f32 %v728, %v731
    %vm733 = vweird.f32 %v727
    %vm734 = vweird.f32 %v728
    %vm735 = vmor %vm733, %vm734
    %v736 = vsel %vm735, %v728, %v732
    %v737 = vand.u32 2147483647, %v727
    %vm738 = vcmp.eq.f32.partialorder %v737, 8.507059e+37
    %v739 = vand.u32 %v727, 2147483648
    %v740 = vor.u32 1.1754944e-38, %v739
    %v741 = vsel %vm738, %v740, %v736
    %v742 = vmul.f32 1.0, %v741
    %v743 = vmul.f32 %v742, %v54
    %v744 = vadd.f32 %v743, %v55
    %v745 = vmul.f32 %v744, %v617
    %747 = vrot.lane.b32.xlu0 %v744, 32
    %v748 = vpop.permute.xlu0 %747
    %v750 = vmul.f32 %v744, %v748
    %752 = vrot.lane.b32.xlu0 %v750, 32
    %v753 = vpop.permute.xlu0 %752
    %v755 = vadd.f32 %v745, %v753
    %v756 = vtanh.pop %v755
    %758 = vrot.lane.b32.xlu0 %v756, 32
    %v759 = vpop.permute.xlu0 %758
    %v761 = vmul.f32 %v744, %v759
    %v762 = vpack.c.bf16 %v761, %v761
    %764 = vrot.lane.b32.xlu0 %v762, 64
    %v765 = vpop.permute.xlu0 %764
    %v767 = vsel %vm205, %v765, 0
    %769 = vmatpush.bf16.msra.mxu0 0
    %770 = vmatpush.bf16.msra.mxu0 0
    %771 = vmatpush.bf16.msra.mxu0 0
    %772 = vmatpush.bf16.msra.mxu0 0
    %773 = vmatpush.bf16.msra.mxu0 0
    %774 = vmatpush.bf16.msra.mxu0 0
    %775 = vmatpush.bf16.msra.mxu0 %v199
    %776 = vmatpush.bf16.msra.mxu0 %v197
    %777 = vmatmul.bf16.gmra.mxu0 %v767
    %v778 = vpop.f32.mrf.mxu0
    %v779 = vadd.f32 0.0, %v778
    %v780 = vpop.f32.mrf.mxu0
    %781 = vdwg.mxu0
    %782 = vmatpush.bf16.msra.mxu0 0
    %783 = vmatpush.bf16.msra.mxu0 0
    %784 = vmatpush.bf16.msra.mxu0 0
    %785 = vmatpush.bf16.msra.mxu0 0
    %786 = vmatpush.bf16.msra.mxu0 0
    %787 = vmatpush.bf16.msra.mxu0 0
    %788 = vmatpush.bf16.msra.mxu0 %v200
    %789 = vmatpush.bf16.msra.mxu0 %v198
    %790 = vmatmul.bf16.gmra.mxu0 %v767
    %v791 = vpop.f32.mrf.mxu0
    %v792 = vadd.f32 0.0, %v791
    %v793 = vpop.f32.mrf.mxu0
    %794 = vdwg.mxu0
    %v795 = vpack.c.bf16 %v716, %v716
    %797 = vrot.lane.b32.xlu0 %v795, 64
    %v798 = vpop.permute.xlu0 %797
    %v800 = vsel %vm205, %v798, 0
    %802 = vmatpush.bf16.msra.mxu0 0
    %803 = vmatpush.bf16.msra.mxu0 0
    %804 = vmatpush.bf16.msra.mxu0 0
    %805 = vmatpush.bf16.msra.mxu0 0
    %806 = vmatpush.bf16.msra.mxu0 0
    %807 = vmatpush.bf16.msra.mxu0 0
    %808 = vmatpush.bf16.msra.mxu0 %v244
    %809 = vmatpush.bf16.msra.mxu0 %v243
    %810 = vmatmul.bf16.gmra.mxu0 %v800
    %v811 = vpop.f32.mrf.mxu0
    %v812 = vadd.f32 0.0, %v811
    %v813 = vpop.f32.mrf.mxu0
    %814 = vdwg.mxu0
    %v815 = vadd.f32 %v792, %v812
    %v816 = vadd.f32 %v815, %v56
    %v817 = vxor.u32 %v816, 2147483648
    %v818 = vmul.f32 %v817, 1.442695
    %v819 = vpow.pop %v818
    %v820 = vadd.f32 %v819, 1.0
    %v821 = vrcp.pop %v820
    %v822 = vmul.f32 %v820, %v821
    %v823 = vsub.f32 1.0, %v822
    %v824 = vmul.f32 %v821, %v823
    %v825 = vadd.f32 %v821, %v824
    %vm826 = vweird.f32 %v820
    %vm827 = vweird.f32 %v821
    %vm828 = vmor %vm826, %vm827
    %v829 = vsel %vm828, %v821, %v825
    %v830 = vand.u32 2147483647, %v820
    %vm831 = vcmp.eq.f32.partialorder %v830, 8.507059e+37
    %v832 = vand.u32 %v820, 2147483648
    %v833 = vor.u32 1.1754944e-38, %v832
    %v834 = vsel %vm831, %v833, %v829
    %v835 = vmul.f32 1.0, %v834
    %v836 = vmul.f32 %v835, %v54
    %v837 = vadd.f32 %v836, %v55
    %v838 = vmul.f32 %v837, %v710
    %840 = vrot.lane.b32.xlu0 %v837, 32
    %v841 = vpop.permute.xlu0 %840
    %v843 = vmul.f32 %v837, %v841
    %845 = vrot.lane.b32.xlu0 %v843, 32
    %v846 = vpop.permute.xlu0 %845
    %v848 = vadd.f32 %v838, %v846
    %v849 = vtanh.pop %v848
    %851 = vrot.lane.b32.xlu0 %v849, 32
    %v852 = vpop.permute.xlu0 %851
    %v854 = vmul.f32 %v837, %v852
    %856 = vrot.lane.b32.xlu0 %v854, 64
    %v857 = vpop.permute.xlu0 %856
    %859 = vst.msk [vmem:[#allocation3 + $0x20] sm:$0xff] %vm205, %v857
    %v860 = vld [vmem:[#allocation2 + $0x28] sm:$0xff]
    %v861 = vadd.f32 %v860, %v779
    %v862 = vxor.u32 %v861, 2147483648
    %v863 = vmul.f32 %v862, 1.442695
    %v864 = vpow.pop %v863
    %v865 = vadd.f32 %v864, 1.0
    %v866 = vrcp.pop %v865
    %v867 = vmul.f32 %v865, %v866
    %v868 = vsub.f32 1.0, %v867
    %v869 = vmul.f32 %v866, %v868
    %v870 = vadd.f32 %v866, %v869
    %vm871 = vweird.f32 %v865
    %vm872 = vweird.f32 %v866
    %vm873 = vmor %vm871, %vm872
    %v874 = vsel %vm873, %v866, %v870
    %v875 = vand.u32 2147483647, %v865
    %vm876 = vcmp.eq.f32.partialorder %v875, 8.507059e+37
    %v877 = vand.u32 %v865, 2147483648
    %v878 = vor.u32 1.1754944e-38, %v877
    %v879 = vsel %vm876, %v878, %v874
    %v880 = vmul.f32 1.0, %v879
    %v881 = vmul.f32 %v880, %v54
    %v882 = vadd.f32 %v881, %v55
    %v883 = vmul.f32 %v882, %v755
    %885 = vrot.lane.b32.xlu0 %v882, 32
    %v886 = vpop.permute.xlu0 %885
    %v888 = vmul.f32 %v882, %v886
    %890 = vrot.lane.b32.xlu0 %v888, 32
    %v891 = vpop.permute.xlu0 %890
    %v893 = vadd.f32 %v883, %v891
    %v894 = vtanh.pop %v893
    %896 = vrot.lane.b32.xlu0 %v894, 32
    %v897 = vpop.permute.xlu0 %896
    %v899 = vmul.f32 %v882, %v897
    %v900 = vpack.c.bf16 %v899, %v899
    %902 = vrot.lane.b32.xlu0 %v900, 64
    %v903 = vpop.permute.xlu0 %902
    %v905 = vsel %vm205, %v903, 0
    %907 = vmatpush.bf16.msra.mxu0 0
    %908 = vmatpush.bf16.msra.mxu0 0
    %909 = vmatpush.bf16.msra.mxu0 0
    %910 = vmatpush.bf16.msra.mxu0 0
    %911 = vmatpush.bf16.msra.mxu0 0
    %912 = vmatpush.bf16.msra.mxu0 0
    %913 = vmatpush.bf16.msra.mxu0 %v199
    %914 = vmatpush.bf16.msra.mxu0 %v197
    %915 = vmatmul.bf16.gmra.mxu0 %v905
    %v916 = vpop.f32.mrf.mxu0
    %v917 = vadd.f32 0.0, %v916
    %v918 = vpop.f32.mrf.mxu0
    %919 = vdwg.mxu0
    %920 = vmatpush.bf16.msra.mxu0 0
    %921 = vmatpush.bf16.msra.mxu0 0
    %922 = vmatpush.bf16.msra.mxu0 0
    %923 = vmatpush.bf16.msra.mxu0 0
    %924 = vmatpush.bf16.msra.mxu0 0
    %925 = vmatpush.bf16.msra.mxu0 0
    %926 = vmatpush.bf16.msra.mxu0 %v200
    %927 = vmatpush.bf16.msra.mxu0 %v198
    %928 = vmatmul.bf16.gmra.mxu0 %v905
    %v929 = vpop.f32.mrf.mxu0
    %v930 = vadd.f32 0.0, %v929
    %v931 = vpop.f32.mrf.mxu0
    %932 = vdwg.mxu0
    %v933 = vpack.c.bf16 %v854, %v854
    %935 = vrot.lane.b32.xlu0 %v933, 64
    %v936 = vpop.permute.xlu0 %935
    %v938 = vsel %vm205, %v936, 0
    %940 = vmatpush.bf16.msra.mxu0 0
    %941 = vmatpush.bf16.msra.mxu0 0
    %942 = vmatpush.bf16.msra.mxu0 0
    %943 = vmatpush.bf16.msra.mxu0 0
    %944 = vmatpush.bf16.msra.mxu0 0
    %945 = vmatpush.bf16.msra.mxu0 0
    %946 = vmatpush.bf16.msra.mxu0 %v244
    %947 = vmatpush.bf16.msra.mxu0 %v243
    %948 = vmatmul.bf16.gmra.mxu0 %v938
    %v949 = vpop.f32.mrf.mxu0
    %v950 = vadd.f32 0.0, %v949
    %v951 = vpop.f32.mrf.mxu0
    %952 = vdwg.mxu0
    %v953 = vadd.f32 %v930, %v950
    %v954 = vadd.f32 %v953, %v56
    %v955 = vxor.u32 %v954, 2147483648
    %v956 = vmul.f32 %v955, 1.442695
    %v957 = vpow.pop %v956
    %v958 = vadd.f32 %v957, 1.0
    %v959 = vrcp.pop %v958
    %v960 = vmul.f32 %v958, %v959
    %v961 = vsub.f32 1.0, %v960
    %v962 = vmul.f32 %v959, %v961
    %v963 = vadd.f32 %v959, %v962
    %vm964 = vweird.f32 %v958
    %vm965 = vweird.f32 %v959
    %vm966 = vmor %vm964, %vm965
    %v967 = vsel %vm966, %v959, %v963
    %v968 = vand.u32 2147483647, %v958
    %vm969 = vcmp.eq.f32.partialorder %v968, 8.507059e+37
    %v970 = vand.u32 %v958, 2147483648
    %v971 = vor.u32 1.1754944e-38, %v970
    %v972 = vsel %vm969, %v971, %v967
    %v973 = vmul.f32 1.0, %v972
    %v974 = vmul.f32 %v973, %v54
    %v975 = vadd.f32 %v974, %v55
    %v976 = vmul.f32 %v975, %v848
    %978 = vrot.lane.b32.xlu0 %v975, 32
    %v979 = vpop.permute.xlu0 %978
    %v981 = vmul.f32 %v975, %v979
    %983 = vrot.lane.b32.xlu0 %v981, 32
    %v984 = vpop.permute.xlu0 %983
    %v986 = vadd.f32 %v976, %v984
    %v987 = vtanh.pop %v986
    %989 = vrot.lane.b32.xlu0 %v987, 32
    %v990 = vpop.permute.xlu0 %989
    %v992 = vmul.f32 %v975, %v990
    %994 = vrot.lane.b32.xlu0 %v992, 64
    %v995 = vpop.permute.xlu0 %994
    %997 = vst.msk [vmem:[#allocation3 + $0x28] sm:$0xff] %vm205, %v995
    %v998 = vld [vmem:[#allocation2 + $0x30] sm:$0xff]
    %v999 = vadd.f32 %v998, %v917
    %v1000 = vxor.u32 %v999, 2147483648
    %v1001 = vmul.f32 %v1000, 1.442695
    %v1002 = vpow.pop %v1001
    %v1003 = vadd.f32 %v1002, 1.0
    %v1004 = vrcp.pop %v1003
    %v1005 = vmul.f32 %v1003, %v1004
    %v1006 = vsub.f32 1.0, %v1005
    %v1007 = vmul.f32 %v1004, %v1006
    %v1008 = vadd.f32 %v1004, %v1007
    %vm1009 = vweird.f32 %v1003
    %vm1010 = vweird.f32 %v1004
    %vm1011 = vmor %vm1009, %vm1010
    %v1012 = vsel %vm1011, %v1004, %v1008
    %v1013 = vand.u32 2147483647, %v1003
    %vm1014 = vcmp.eq.f32.partialorder %v1013, 8.507059e+37
    %v1015 = vand.u32 %v1003, 2147483648
    %v1016 = vor.u32 1.1754944e-38, %v1015
    %v1017 = vsel %vm1014, %v1016, %v1012
    %v1018 = vmul.f32 1.0, %v1017
    %v1019 = vmul.f32 %v1018, %v54
    %v1020 = vadd.f32 %v1019, %v55
    %v1021 = vmul.f32 %v1020, %v893
    %1023 = vrot.lane.b32.xlu0 %v1020, 32
    %v1024 = vpop.permute.xlu0 %1023
    %v1026 = vmul.f32 %v1020, %v1024
    %1028 = vrot.lane.b32.xlu0 %v1026, 32
    %v1029 = vpop.permute.xlu0 %1028
    %v1031 = vadd.f32 %v1021, %v1029
    %v1032 = vtanh.pop %v1031
    %1034 = vrot.lane.b32.xlu0 %v1032, 32
    %v1035 = vpop.permute.xlu0 %1034
    %v1037 = vmul.f32 %v1020, %v1035
    %v1038 = vpack.c.bf16 %v1037, %v1037
    %1040 = vrot.lane.b32.xlu0 %v1038, 64
    %v1041 = vpop.permute.xlu0 %1040
    %v1043 = vsel %vm205, %v1041, 0
    %1045 = vmatpush.bf16.msra.mxu0 0
    %1046 = vmatpush.bf16.msra.mxu0 0
    %1047 = vmatpush.bf16.msra.mxu0 0
    %1048 = vmatpush.bf16.msra.mxu0 0
    %1049 = vmatpush.bf16.msra.mxu0 0
    %1050 = vmatpush.bf16.msra.mxu0 0
    %1051 = vmatpush.bf16.msra.mxu0 %v199
    %1052 = vmatpush.bf16.msra.mxu0 %v197
    %1053 = vmatmul.bf16.gmra.mxu0 %v1043
    %v1054 = vpop.f32.mrf.mxu0
    %v1055 = vadd.f32 0.0, %v1054
    %v1056 = vpop.f32.mrf.mxu0
    %1057 = vdwg.mxu0
    %1058 = vmatpush.bf16.msra.mxu0 0
    %1059 = vmatpush.bf16.msra.mxu0 0
    %1060 = vmatpush.bf16.msra.mxu0 0
    %1061 = vmatpush.bf16.msra.mxu0 0
    %1062 = vmatpush.bf16.msra.mxu0 0
    %1063 = vmatpush.bf16.msra.mxu0 0
    %1064 = vmatpush.bf16.msra.mxu0 %v200
    %1065 = vmatpush.bf16.msra.mxu0 %v198
    %1066 = vmatmul.bf16.gmra.mxu0 %v1043
    %v1067 = vpop.f32.mrf.mxu0
    %v1068 = vadd.f32 0.0, %v1067
    %v1069 = vpop.f32.mrf.mxu0
    %1070 = vdwg.mxu0
    %v1071 = vpack.c.bf16 %v992, %v992
    %1073 = vrot.lane.b32.xlu0 %v1071, 64
    %v1074 = vpop.permute.xlu0 %1073
    %v1076 = vsel %vm205, %v1074, 0
    %1078 = vmatpush.bf16.msra.mxu0 0
    %1079 = vmatpush.bf16.msra.mxu0 0
    %1080 = vmatpush.bf16.msra.mxu0 0
    %1081 = vmatpush.bf16.msra.mxu0 0
    %1082 = vmatpush.bf16.msra.mxu0 0
    %1083 = vmatpush.bf16.msra.mxu0 0
    %1084 = vmatpush.bf16.msra.mxu0 %v244
    %1085 = vmatpush.bf16.msra.mxu0 %v243
    %1086 = vmatmul.bf16.gmra.mxu0 %v1076
    %v1087 = vpop.f32.mrf.mxu0
    %v1088 = vadd.f32 0.0, %v1087
    %v1089 = vpop.f32.mrf.mxu0
    %1090 = vdwg.mxu0
    %v1091 = vadd.f32 %v1068, %v1088
    %v1092 = vadd.f32 %v1091, %v56
    %v1093 = vxor.u32 %v1092, 2147483648
    %v1094 = vmul.f32 %v1093, 1.442695
    %v1095 = vpow.pop %v1094
    %v1096 = vadd.f32 %v1095, 1.0
    %v1097 = vrcp.pop %v1096
    %v1098 = vmul.f32 %v1096, %v1097
    %v1099 = vsub.f32 1.0, %v1098
    %v1100 = vmul.f32 %v1097, %v1099
    %v1101 = vadd.f32 %v1097, %v1100
    %vm1102 = vweird.f32 %v1096
    %vm1103 = vweird.f32 %v1097
    %vm1104 = vmor %vm1102, %vm1103
    %v1105 = vsel %vm1104, %v1097, %v1101
    %v1106 = vand.u32 2147483647, %v1096
    %vm1107 = vcmp.eq.f32.partialorder %v1106, 8.507059e+37
    %v1108 = vand.u32 %v1096, 2147483648
    %v1109 = vor.u32 1.1754944e-38, %v1108
    %v1110 = vsel %vm1107, %v1109, %v1105
    %v1111 = vmul.f32 1.0, %v1110
    %v1112 = vmul.f32 %v1111, %v54
    %v1113 = vadd.f32 %v1112, %v55
    %v1114 = vmul.f32 %v1113, %v986
    %1116 = vrot.lane.b32.xlu0 %v1113, 32
    %v1117 = vpop.permute.xlu0 %1116
    %v1119 = vmul.f32 %v1113, %v1117
    %1121 = vrot.lane.b32.xlu0 %v1119, 32
    %v1122 = vpop.permute.xlu0 %1121
    %v1124 = vadd.f32 %v1114, %v1122
    %v1125 = vtanh.pop %v1124
    %1127 = vrot.lane.b32.xlu0 %v1125, 32
    %v1128 = vpop.permute.xlu0 %1127
    %v1130 = vmul.f32 %v1113, %v1128
    %1132 = vrot.lane.b32.xlu0 %v1130, 64
    %v1133 = vpop.permute.xlu0 %1132
    %1135 = vst.msk [vmem:[#allocation3 + $0x30] sm:$0xff] %vm205, %v1133
    %v1136 = vld [vmem:[#allocation2 + $0x38] sm:$0xff]
    %v1137 = vadd.f32 %v1136, %v1055
    %v1138 = vxor.u32 %v1137, 2147483648
    %v1139 = vmul.f32 %v1138, 1.442695
    %v1140 = vpow.pop %v1139
    %v1141 = vadd.f32 %v1140, 1.0
    %v1142 = vrcp.pop %v1141
    %v1143 = vmul.f32 %v1141, %v1142
    %v1144 = vsub.f32 1.0, %v1143
    %v1145 = vmul.f32 %v1142, %v1144
    %v1146 = vadd.f32 %v1142, %v1145
    %vm1147 = vweird.f32 %v1141
    %vm1148 = vweird.f32 %v1142
    %vm1149 = vmor %vm1147, %vm1148
    %v1150 = vsel %vm1149, %v1142, %v1146
    %v1151 = vand.u32 2147483647, %v1141
    %vm1152 = vcmp.eq.f32.partialorder %v1151, 8.507059e+37
    %v1153 = vand.u32 %v1141, 2147483648
    %v1154 = vor.u32 1.1754944e-38, %v1153
    %v1155 = vsel %vm1152, %v1154, %v1150
    %v1156 = vmul.f32 1.0, %v1155
    %v1157 = vmul.f32 %v1156, %v54
    %v1158 = vadd.f32 %v1157, %v55
    %v1159 = vmul.f32 %v1158, %v1031
    %1161 = vrot.lane.b32.xlu0 %v1158, 32
    %v1162 = vpop.permute.xlu0 %1161
    %v1164 = vmul.f32 %v1158, %v1162
    %1166 = vrot.lane.b32.xlu0 %v1164, 32
    %v1167 = vpop.permute.xlu0 %1166
    %v1169 = vadd.f32 %v1159, %v1167
    %v1170 = vtanh.pop %v1169
    %1172 = vrot.lane.b32.xlu0 %v1170, 32
    %v1173 = vpop.permute.xlu0 %1172
    %v1175 = vmul.f32 %v1158, %v1173
    %v1176 = vpack.c.bf16 %v1175, %v1175
    %1178 = vrot.lane.b32.xlu0 %v1176, 64
    %v1179 = vpop.permute.xlu0 %1178
    %v1181 = vsel %vm205, %v1179, 0
    %1183 = vmatpush.bf16.msra.mxu0 0
    %1184 = vmatpush.bf16.msra.mxu0 0
    %1185 = vmatpush.bf16.msra.mxu0 0
    %1186 = vmatpush.bf16.msra.mxu0 0
    %1187 = vmatpush.bf16.msra.mxu0 0
    %1188 = vmatpush.bf16.msra.mxu0 0
    %1189 = vmatpush.bf16.msra.mxu0 %v200
    %1190 = vmatpush.bf16.msra.mxu0 %v198
    %1191 = vmatmul.bf16.gmra.mxu0 %v1181
    %v1192 = vpop.f32.mrf.mxu0
    %v1193 = vadd.f32 0.0, %v1192
    %v1194 = vpop.f32.mrf.mxu0
    %1195 = vdwg.mxu0
    %v1196 = vpack.c.bf16 %v1130, %v1130
    %1198 = vrot.lane.b32.xlu0 %v1196, 64
    %v1199 = vpop.permute.xlu0 %1198
    %v1201 = vsel %vm205, %v1199, 0
    %1203 = vmatpush.bf16.msra.mxu0 0
    %1204 = vmatpush.bf16.msra.mxu0 0
    %1205 = vmatpush.bf16.msra.mxu0 0
    %1206 = vmatpush.bf16.msra.mxu0 0
    %1207 = vmatpush.bf16.msra.mxu0 0
    %1208 = vmatpush.bf16.msra.mxu0 0
    %1209 = vmatpush.bf16.msra.mxu0 %v244
    %1210 = vmatpush.bf16.msra.mxu0 %v243
    %1211 = vmatmul.bf16.gmra.mxu0 %v1201
    %v1212 = vpop.f32.mrf.mxu0
    %v1213 = vadd.f32 0.0, %v1212
    %v1214 = vpop.f32.mrf.mxu0
    %1215 = vdwg.mxu0
    %v1216 = vadd.f32 %v1193, %v1213
    %v1217 = vadd.f32 %v1216, %v56
    %v1218 = vxor.u32 %v1217, 2147483648
    %v1219 = vmul.f32 %v1218, 1.442695
    %v1220 = vpow.pop %v1219
    %v1221 = vadd.f32 %v1220, 1.0
    %v1222 = vrcp.pop %v1221
    %v1223 = vmul.f32 %v1221, %v1222
    %v1224 = vsub.f32 1.0, %v1223
    %v1225 = vmul.f32 %v1222, %v1224
    %v1226 = vadd.f32 %v1222, %v1225
    %vm1227 = vweird.f32 %v1221
    %vm1228 = vweird.f32 %v1222
    %vm1229 = vmor %vm1227, %vm1228
    %v1230 = vsel %vm1229, %v1222, %v1226
    %v1231 = vand.u32 2147483647, %v1221
    %vm1232 = vcmp.eq.f32.partialorder %v1231, 8.507059e+37
    %v1233 = vand.u32 %v1221, 2147483648
    %v1234 = vor.u32 1.1754944e-38, %v1233
    %v1235 = vsel %vm1232, %v1234, %v1230
    %v1236 = vmul.f32 1.0, %v1235
    %v1237 = vmul.f32 %v1236, %v54
    %v1238 = vadd.f32 %v1237, %v55
    %v1239 = vmul.f32 %v1238, %v1124
    %1241 = vrot.lane.b32.xlu0 %v1238, 32
    %v1242 = vpop.permute.xlu0 %1241
    %v1244 = vmul.f32 %v1238, %v1242
    %1246 = vrot.lane.b32.xlu0 %v1244, 32
    %v1247 = vpop.permute.xlu0 %1246
    %v1249 = vadd.f32 %v1239, %v1247
    %v1250 = vtanh.pop %v1249
    %1252 = vrot.lane.b32.xlu0 %v1250, 32
    %v1253 = vpop.permute.xlu0 %1252
    %v1255 = vmul.f32 %v1238, %v1253
    %1257 = vrot.lane.b32.xlu0 %v1255, 64
    %v1258 = vpop.permute.xlu0 %1257
    %1260 = vst.msk [vmem:[#allocation3 + $0x38] sm:$0xff] %vm205, %v1258
    %v1261 = vld [vmem:[#allocation3] sm:$0xff]
    %v1262 = vld [vmem:[#allocation3 + $0x8] sm:$0xff]
    %v1263 = vld [vmem:[#allocation3 + $0x10] sm:$0xff]
    %v1264 = vld [vmem:[#allocation3 + $0x18] sm:$0xff]
    %v1265 = vld [vmem:[#allocation3 + $0x20] sm:$0xff]
    %v1266 = vld [vmem:[#allocation3 + $0x28] sm:$0xff]
    %v1267 = vld [vmem:[#allocation3 + $0x30] sm:$0xff]
    %v1268 = vld [vmem:[#allocation3 + $0x38] sm:$0xff]
    %v1269 = vpack.c.bf16 %v1262, %v1261
    %v1270 = vpack.c.bf16 %v1264, %v1263
    %v1271 = vpack.c.bf16 %v1266, %v1265
    %v1272 = vpack.c.bf16 %v1268, %v1267
    %v1277 = vunpack.c.l.b16 %v42
    %v1278 = vunpack.c.l.b16 %v43
    %v1279 = vunpack.c.l.b16 %v44
    %v1280 = vunpack.c.l.b16 %v45
    %v1281 = vpack.c.b16 %v1278, %v1277
    %v1282 = vpack.c.b16 %v1280, %v1279
    %v1286 = vsel %vm205, %v1269, 0
    %v1289 = vsel %vm205, %v1270, 0
    %v1292 = vsel %vm205, %v1271, 0
    %v1295 = vsel %vm205, %v1272, 0
    %1297 = vmatpush.bf16.msra.mxu0 0
    %1298 = vmatpush.bf16.msra.mxu0 0
    %1299 = vmatpush.bf16.msra.mxu0 0
    %1300 = vmatpush.bf16.msra.mxu0 0
    %1301 = vmatpush.bf16.msra.mxu0 0
    %1302 = vmatpush.bf16.msra.mxu0 0
    %1303 = vmatpush.bf16.msra.mxu0 %v1282
    %1304 = vmatpush.bf16.msra.mxu0 %v1281
    %1305 = vmatmul.bf16.gmra.mxu0 %v1286
    %v1306 = vpop.f32.mrf.mxu0
    %v1307 = vadd.f32 0.0, %v1306
    %v1308 = vpop.f32.mrf.mxu0
    %v1309 = vadd.f32 0.0, %v1308
    %1310 = vmatmul.bf16.gmra.mxu0 %v1289
    %v1311 = vpop.f32.mrf.mxu0
    %v1312 = vadd.f32 0.0, %v1311
    %v1313 = vpop.f32.mrf.mxu0
    %v1314 = vadd.f32 0.0, %v1313
    %1315 = vmatmul.bf16.gmra.mxu0 %v1292
    %v1316 = vpop.f32.mrf.mxu0
    %v1317 = vadd.f32 0.0, %v1316
    %v1318 = vpop.f32.mrf.mxu0
    %v1319 = vadd.f32 0.0, %v1318
    %1320 = vmatmul.bf16.gmra.mxu0 %v1295
    %v1321 = vpop.f32.mrf.mxu0
    %v1322 = vadd.f32 0.0, %v1321
    %v1323 = vpop.f32.mrf.mxu0
    %v1324 = vadd.f32 0.0, %v1323
    %1325 = vdwg.mxu0
    %v1326 = vperm.slane %v50, 2
    %v1327 = vadd.f32 %v1307, %v1326
    %v1328 = vadd.f32 %v1309, %v1326
    %v1329 = vadd.f32 %v1312, %v1326
    %v1330 = vadd.f32 %v1314, %v1326
    %v1331 = vadd.f32 %v1317, %v1326
    %v1332 = vadd.f32 %v1319, %v1326
    %v1333 = vadd.f32 %v1322, %v1326
    %v1334 = vadd.f32 %v1324, %v1326
    %v1335 = vtanh.pop %v1327
    %v1336 = vtanh.pop %v1328
    %v1337 = vtanh.pop %v1329
    %v1338 = vtanh.pop %v1330
    %v1339 = vtanh.pop %v1331
    %v1340 = vtanh.pop %v1332
    %v1341 = vtanh.pop %v1333
    %v1342 = vtanh.pop %v1334
    %v1343 = vperm.slane %v50, 3
    %v1344 = vmul.f32 %v1335, %v1343
    %v1345 = vmul.f32 %v1336, %v1343
    %v1346 = vmul.f32 %v1337, %v1343
    %v1347 = vmul.f32 %v1338, %v1343
    %v1348 = vmul.f32 %v1339, %v1343
    %v1349 = vmul.f32 %v1340, %v1343
    %v1350 = vmul.f32 %v1341, %v1343
    %v1351 = vmul.f32 %v1342, %v1343
    %v1352 = vsel %vm205, %v1344, 0.0
    %1353 = vadd.xlane.f32.xlu0 %v1352
    %v1354 = vpop.xlane.xlu0 %1353
    %v1355 = vsel %vm205, %v1345, 0.0
    %1356 = vadd.xlane.f32.xlu0 %v1355
    %v1357 = vpop.xlane.xlu0 %1356
    %v1358 = vsel %vm205, %v1346, 0.0
    %1359 = vadd.xlane.f32.xlu0 %v1358
    %v1360 = vpop.xlane.xlu0 %1359
    %v1361 = vsel %vm205, %v1347, 0.0
    %1362 = vadd.xlane.f32.xlu0 %v1361
    %v1363 = vpop.xlane.xlu0 %1362
    %v1364 = vsel %vm205, %v1348, 0.0
    %1365 = vadd.xlane.f32.xlu0 %v1364
    %v1366 = vpop.xlane.xlu0 %1365
    %v1367 = vsel %vm205, %v1349, 0.0
    %1368 = vadd.xlane.f32.xlu0 %v1367
    %v1369 = vpop.xlane.xlu0 %1368
    %v1370 = vsel %vm205, %v1350, 0.0
    %1371 = vadd.xlane.f32.xlu0 %v1370
    %v1372 = vpop.xlane.xlu0 %1371
    %v1373 = vsel %vm205, %v1351, 0.0
    %1374 = vadd.xlane.f32.xlu0 %v1373
    %v1375 = vpop.xlane.xlu0 %1374
    %v1376 = vadd.f32 %v1354, %v1326
    %v1377 = vadd.f32 %v1357, %v1326
    %v1378 = vadd.f32 %v1360, %v1326
    %v1379 = vadd.f32 %v1363, %v1326
    %v1380 = vadd.f32 %v1366, %v1326
    %v1381 = vadd.f32 %v1369, %v1326
    %v1382 = vadd.f32 %v1372, %v1326
    %v1383 = vadd.f32 %v1375, %v1326
    %vm1384 = vcmask 269568
    %v1385 = vsel %vm1384, %v1376, -inf
    %v1386 = vsel %vm1384, %v1377, -inf
    %v1387 = vsel %vm1384, %v1378, -inf
    %v1388 = vsel %vm1384, %v1379, -inf
    %v1389 = vsel %vm1384, %v1380, -inf
    %v1390 = vmax.f32 %v1385, %v1389
    %v1391 = vsel %vm1384, %v1381, -inf
    %v1392 = vmax.f32 %v1386, %v1391
    %v1393 = vsel %vm1384, %v1382, -inf
    %v1394 = vmax.f32 %v1387, %v1393
    %v1395 = vsel %vm1384, %v1383, -inf
    %v1396 = vmax.f32 %v1388, %v1395
    %v1397 = vmax.f32 %v1390, %v1392
    %v1398 = vmax.f32 %v1394, %v1396
    %v1399 = vmax.f32 %v1397, %v1398
    %v1400 = vsub.f32 %v1376, %v1399
    %v1401 = vsub.f32 %v1377, %v1399
    %v1402 = vsub.f32 %v1378, %v1399
    %v1403 = vsub.f32 %v1379, %v1399
    %v1404 = vsub.f32 %v1380, %v1399
    %v1405 = vsub.f32 %v1381, %v1399
    %v1406 = vsub.f32 %v1382, %v1399
    %v1407 = vsub.f32 %v1383, %v1399
    %v1408 = vmul.f32 %v1400, 1.442695
    %v1409 = vpow.pop %v1408
    %v1410 = vmul.f32 %v1401, 1.442695
    %v1411 = vpow.pop %v1410
    %v1412 = vmul.f32 %v1402, 1.442695
    %v1413 = vpow.pop %v1412
    %v1414 = vmul.f32 %v1403, 1.442695
    %v1415 = vpow.pop %v1414
    %v1416 = vmul.f32 %v1404, 1.442695
    %v1417 = vpow.pop %v1416
    %v1418 = vmul.f32 %v1405, 1.442695
    %v1419 = vpow.pop %v1418
    %v1420 = vmul.f32 %v1406, 1.442695
    %v1421 = vpow.pop %v1420
    %v1422 = vmul.f32 %v1407, 1.442695
    %v1423 = vpow.pop %v1422
    %v1424 = vsel %vm1384, %v1409, 0.0
    %v1425 = vsel %vm1384, %v1411, 0.0
    %v1426 = vadd.f32 %v1424, %v1425
    %v1427 = vsel %vm1384, %v1413, 0.0
    %v1428 = vadd.f32 %v1426, %v1427
    %v1429 = vsel %vm1384, %v1415, 0.0
    %v1430 = vadd.f32 %v1428, %v1429
    %v1431 = vsel %vm1384, %v1417, 0.0
    %v1432 = vadd.f32 %v1430, %v1431
    %v1433 = vsel %vm1384, %v1419, 0.0
    %v1434 = vadd.f32 %v1432, %v1433
    %v1435 = vsel %vm1384, %v1421, 0.0
    %v1436 = vadd.f32 %v1434, %v1435
    %v1437 = vsel %vm1384, %v1423, 0.0
    %v1438 = vadd.f32 %v1436, %v1437
    %v1439 = vrcp.pop %v1438
    %v1440 = vmul.f32 %v1438, %v1439
    %v1441 = vsub.f32 1.0, %v1440
    %v1442 = vmul.f32 %v1439, %v1441
    %v1443 = vadd.f32 %v1439, %v1442
    %vm1444 = vweird.f32 %v1438
    %vm1445 = vweird.f32 %v1439
    %vm1446 = vmor %vm1444, %vm1445
    %v1447 = vsel %vm1446, %v1439, %v1443
    %v1448 = vand.u32 2147483647, %v1438
    %vm1449 = vcmp.eq.f32.partialorder %v1448, 8.507059e+37
    %v1450 = vand.u32 %v1438, 2147483648
    %v1451 = vor.u32 1.1754944e-38, %v1450
    %v1452 = vsel %vm1449, %v1451, %v1447
    %v1453 = vmul.f32 %v1409, %v1452
    %v1454 = vmul.f32 %v1411, %v1452
    %v1455 = vmul.f32 %v1413, %v1452
    %v1456 = vmul.f32 %v1415, %v1452
    %v1457 = vmul.f32 %v1417, %v1452
    %v1458 = vmul.f32 %v1419, %v1452
    %v1459 = vmul.f32 %v1421, %v1452
    %v1460 = vmul.f32 %v1423, %v1452
    %1462 = vset.pattern.permute.xlu0 32
    %1463 = vperm.xlu0 %1462, %v1453
    %v1464 = vpop.permute.xlu0 %1463
    %1467 = vset.pattern.permute.xlu0 32
    %1468 = vperm.xlu0 %1467, %v1454
    %v1469 = vpop.permute.xlu0 %1468
    %1472 = vset.pattern.permute.xlu0 32
    %1473 = vperm.xlu0 %1472, %v1455
    %v1474 = vpop.permute.xlu0 %1473
    %1477 = vset.pattern.permute.xlu0 32
    %1478 = vperm.xlu0 %1477, %v1456
    %v1479 = vpop.permute.xlu0 %1478
    %1482 = vset.pattern.permute.xlu0 32
    %1483 = vperm.xlu0 %1482, %v1457
    %v1484 = vpop.permute.xlu0 %1483
    %1487 = vset.pattern.permute.xlu0 32
    %1488 = vperm.xlu0 %1487, %v1458
    %v1489 = vpop.permute.xlu0 %1488
    %1492 = vset.pattern.permute.xlu0 32
    %1493 = vperm.xlu0 %1492, %v1459
    %v1494 = vpop.permute.xlu0 %1493
    %1497 = vset.pattern.permute.xlu0 32
    %1498 = vperm.xlu0 %1497, %v1460
    %v1499 = vpop.permute.xlu0 %1498
    %v1501 = vmul.f32 %v1261, %v1464
    %v1502 = vmul.f32 %v1262, %v1469
    %v1503 = vmul.f32 %v1263, %v1474
    %v1504 = vmul.f32 %v1264, %v1479
    %v1505 = vmul.f32 %v1265, %v1484
    %v1506 = vmul.f32 %v1266, %v1489
    %v1507 = vmul.f32 %v1267, %v1494
    %v1508 = vmul.f32 %v1268, %v1499
    %v1509 = vsel %vm205, %v1501, 0.0
    %v1510 = vsel %vm205, %v1502, 0.0
    %v1511 = vadd.f32 %v1509, %v1510
    %v1512 = vsel %vm205, %v1503, 0.0
    %v1513 = vadd.f32 %v1511, %v1512
    %v1514 = vsel %vm205, %v1504, 0.0
    %v1515 = vadd.f32 %v1513, %v1514
    %v1516 = vsel %vm205, %v1505, 0.0
    %v1517 = vadd.f32 %v1515, %v1516
    %v1518 = vsel %vm205, %v1506, 0.0
    %v1519 = vadd.f32 %v1517, %v1518
    %v1520 = vsel %vm205, %v1507, 0.0
    %v1521 = vadd.f32 %v1519, %v1520
    %v1522 = vsel %vm205, %v1508, 0.0
    %v1523 = vadd.f32 %v1521, %v1522
    %v1524 = vpack.c.bf16 %v1523, %v1523
    %v1525 = vperm.slane %v50, 4
    %v1530 = vunpack.c.l.b16 %v46
    %v1531 = vunpack.c.l.b16 %v47
    %v1532 = vunpack.c.l.b16 %v48
    %v1533 = vunpack.c.l.b16 %v49
    %v1534 = vpack.c.b16 %v1531, %v1530
    %v1535 = vpack.c.b16 %v1533, %v1532
    %v1539 = vsel %vm205, %v1524, 0
    %1541 = vmatpush.bf16.msra.mxu0 0
    %1542 = vmatpush.bf16.msra.mxu0 0
    %1543 = vmatpush.bf16.msra.mxu0 0
    %1544 = vmatpush.bf16.msra.mxu0 0
    %1545 = vmatpush.bf16.msra.mxu0 0
    %1546 = vmatpush.bf16.msra.mxu0 0
    %1547 = vmatpush.bf16.msra.mxu0 %v1535
    %1548 = vmatpush.bf16.msra.mxu0 %v1534
    %1549 = vmatmul.bf16.gmra.mxu0 %v1539
    %v1550 = vpop.f32.mrf.mxu0
    %v1551 = vadd.f32 %v1525, %v1550
    %v1552 = vpop.f32.mrf.mxu0
    %1553 = vdwg.mxu0
    %1554 = vst [vmem:[#allocation7] sm:$0xff] %v1551
    // Predicated region
    $region18: #{tpu_custom_call.1} parent=1 // pred_check
      _
    $region19: #{tpu_custom_call.1} parent=1 // pred_check_branch
      %1556 = sbr.rel (0) target = $region21
    $region20: #{tpu_custom_call.1} parent=1 // pred_region
      %1558 = vsyncadd [#allocation6], 0
      %s1560 = sshll.u32 [#allocation7], 4
      %s1561 = int_to_ptr.vmem [resolvable:$true] %s1560
      %s1562 = sshll.u32 %s3, 4
      %s1563 = int_to_ptr.hbm [resolvable:$true] %s1562
      %1565 = dma.vmem_to_hbm [thread:$0]  %s1561, 128, %s1563, [#allocation6]
    $region21: #{tpu_custom_call.1} parent=1 // pred_fallthru
      _
    // Predicated region
    $region22: #{tpu_custom_call.1} parent=1 // pred_check
      _
    $region23: #{tpu_custom_call.1} parent=1 // pred_check_branch
      %1567 = sbr.rel (0) target = $region25
    $region24: #{tpu_custom_call.1} parent=1 // pred_region
      %1569 = dma.done [#allocation6], 128
    $region25: #{tpu_custom_call.1} parent=1 // pred_fallthru
      _
    %1570 = vsyncpa [#allocation5], 1
    %1571 = vsyncpa [#allocation6], 1

</llo_original>
